<compile_context>
chip_gen: v7x
topology: tpu7x:2x2x1
jax: 0.10.0
libtpu: 0.0.40
codegen_flags: <defaults>
</compile_context>

<pallas_src>
import functools
import math

import jax
import jax.numpy as jnp
from jax.experimental import pallas as pl
from jax.experimental.pallas import tpu as pltpu


# ---------------------------------------------------------------------------
# Kernels
# ---------------------------------------------------------------------------
def _lane_dense_store(o_ref, out3):
    """Store a (bn, L, D) f32 value into the lane-dense (bn, L*D) output slab."""
    L = out3.shape[1]
    # Lane-axis concatenation of the per-timestep (bn, D) slices builds the full
    # 128-lane-aligned rows, so the final store is an unmasked full-lane store.
    slab = jnp.concatenate([out3[:, l, :] for l in range(L)], axis=-1)
    o_ref[...] = slab.astype(o_ref.dtype)


def _se_kernel(xc_ref, w_ref, a_ref, wl_ref, b_ref, o_ref, *, bn, L, D):
    """Fused value embedding (circular k=3 conv as ONE matmul) + spatial PE."""
    # (bn*L, 3C) @ (3C, D): all three conv taps in a single MXU matmul.
    val = jnp.dot(xc_ref[...], w_ref[...], preferred_element_type=jnp.float32)
    # Spatial PE: Linear(N, d_model) applied to this tile's adjacency rows.
    pe = jnp.dot(a_ref[...], wl_ref[...], preferred_element_type=jnp.float32)
    pe = pe + b_ref[...]                                   # (bn, D)
    out3 = val.reshape(bn, L, D) + pe[:, None, :]          # dropout(p=0) == id
    _lane_dense_store(o_ref, out3)


def _se_kernel_hoisted_pe(xc_ref, w_ref, pe_ref, o_ref, *, bn, L, D):
    """Variant with the PE matmul hoisted to the wrapper (large N / v7x VMEM)."""
    val = jnp.dot(xc_ref[...], w_ref[...], preferred_element_type=jnp.float32)
    out3 = val.reshape(bn, L, D) + pe_ref[...][:, None, :]
    _lane_dense_store(o_ref, out3)


# ---------------------------------------------------------------------------
# Wrapper
# ---------------------------------------------------------------------------
def _pick_block_n(N, L, c3, D):
    """Large node tiles (amortize ~0.35us/grid step), >= 2 grid steps for the
    v7x megacore, capped so double-buffered streamed tiles stay ~<=16 MiB."""
    half = -(-N // 2)
    bn = max(8, min(256, -(-half // 8) * 8))                 # multiple of 8 sublanes
    per_node = 4 * L * 2 * (max(c3, 128) + max(D, 128))      # lane-padded, 2 buffers
    cap = max(8, ((16 << 20) // max(per_node, 1)) // 8 * 8)
    return min(bn, cap)


def spatial_embedding(x, conv_w, A, lin_w, lin_b, *, block_n=None,
                      compute_dtype=None, out_dtype=None, hoist_pe=None):
    """Forward of SpatialEmbedding.

    x:      (N, L, c_in)        node time-series
    conv_w: (d_model, c_in, 3)  circular Conv1d weight (TokenEmbedding, no bias)
    A:      (N, N)              normalized dense adjacency (SpatialPE.A)
    lin_w:  (d_model, N)        SpatialPE.linear.weight
    lin_b:  (d_model,)          SpatialPE.linear.bias
    returns (N, L, d_model)
    """
    N, L, C = x.shape
    D = conv_w.shape[0]
    compute_dtype = compute_dtype or x.dtype   # pass jnp.bfloat16 on v5e/v6e
    out_dtype = out_dtype or x.dtype

    if block_n is None:
        block_n = _pick_block_n(N, L, 3 * C, D)
    n_pad = -(-N // block_n) * block_n          # node dim padded (handles N % block_n)
    grid = (n_pad // block_n,)

    if hoist_pe is None:
        # Keep the (N, D) linear weight + (block_n, N) adjacency tile resident
        # only while they are small; for large graphs (v7x: 64 MiB VMEM) hoist
        # the tiny A @ Wl^T + b matmul to XLA and stream pe tiles instead.
        hoist_pe = 4 * (N * D + block_n * N) > (8 << 20)

    # ---- wrapper-side packing (plain JAX glue) --------------------------------
    # Circular k=3 conv  ==  one matmul against the shifted-concat input:
    #   out[t] = W0 @ x[t-1] + W1 @ x[t] + W2 @ x[t+1]     (indices mod L)
    x_cat = jnp.concatenate(
        [jnp.roll(x, 1, axis=1), x, jnp.roll(x, -1, axis=1)], axis=-1)      # (N, L, 3C)
    w_cat = jnp.concatenate(
        [conv_w[:, :, 0].T, conv_w[:, :, 1].T, conv_w[:, :, 2].T], axis=0)  # (3C, D)
    if n_pad != N:
        x_cat = jnp.pad(x_cat, ((0, n_pad - N), (0, 0), (0, 0)))
    x_cat = x_cat.reshape(n_pad * L, 3 * C).astype(compute_dtype)
    w_cat = w_cat.astype(compute_dtype)

    if hoist_pe:
        pe = (A @ lin_w.T + lin_b).astype(jnp.float32)                       # (N, D)
        if n_pad != N:
            pe = jnp.pad(pe, ((0, n_pad - N), (0, 0)))
        kernel = functools.partial(_se_kernel_hoisted_pe, bn=block_n, L=L, D=D)
        operands = (x_cat, w_cat, pe)
    else:
        a_pad = A.astype(jnp.float32)              # PE path kept in f32 (tiny)
        if n_pad != N:
            a_pad = jnp.pad(a_pad, ((0, n_pad - N), (0, 0)))
        wl = lin_w.T.astype(jnp.float32)                                      # (N, D)
        b2 = lin_b.reshape(1, D).astype(jnp.float32)
        kernel = functools.partial(_se_kernel, bn=block_n, L=L, D=D)
        operands = (x_cat, w_cat, a_pad, wl, b2)

    # ---- VMEM budget for the chosen tile (raise the scoped limit to match) ----
    def padded(r, c, nbytes):
        return (-(-r // 8) * 8) * (-(-c // 128) * 128) * nbytes

    in_b = jnp.dtype(compute_dtype).itemsize
    out_b = jnp.dtype(out_dtype).itemsize
    est = 2 * padded(block_n * L, 3 * C, in_b) + 2 * padded(block_n, L * D, out_b)
    est += padded(3 * C, D, in_b)
    if hoist_pe:
        est += 2 * padded(block_n, D, 4)
    else:
        est += 2 * padded(block_n, N, 4) + padded(N, D, 4) + padded(1, D, 4)
    vmem_limit = int(min(64 << 20, max(32 << 20, 2 * est)))   # safe on v5e/v6e/v7x

    def run(single_buffer_consts):
        def const_spec(shape):
            idx = lambda *_: (0,) * len(shape)
            if single_buffer_consts:
                # Constant block index -> one buffer is enough (saves VMEM/DMAs).
                return pl.BlockSpec(shape, idx, pipeline_mode=pl.Buffered(1))
            return pl.BlockSpec(shape, idx)

        xc_spec = pl.BlockSpec((block_n * L, 3 * C), lambda i: (i, 0))
        out_spec = pl.BlockSpec((block_n, L * D), lambda i: (i, 0))   # lane-dense slab
        if hoist_pe:
            in_specs = [xc_spec, const_spec((3 * C, D)),
                        pl.BlockSpec((block_n, D), lambda i: (i, 0))]
        else:
            in_specs = [xc_spec, const_spec((3 * C, D)),
                        pl.BlockSpec((block_n, N), lambda i: (i, 0)),
                        const_spec((N, D)), const_spec((1, D))]

        return pl.pallas_call(
            kernel,
            out_shape=jax.ShapeDtypeStruct((n_pad, L * D), out_dtype),
            grid_spec=pltpu.PrefetchScalarGridSpec(
                num_scalar_prefetch=0,
                grid=grid,
                in_specs=in_specs,
                out_specs=out_spec,
            ),
            compiler_params=pltpu.CompilerParams(
                dimension_semantics=("parallel",),
                vmem_limit_bytes=vmem_limit),
        )(*operands)

    try:
        out2d = run(single_buffer_consts=True)
    except Exception:  # pipeline_mode / Buffered(1) unsupported -> default buffering
        out2d = run(single_buffer_consts=False)

    # wrapper-side layout plumbing: lane-dense slab -> (N, L, d_model)
    return out2d[:N].reshape(N, L, D)


# ---------------------------------------------------------------------------
# Pure-JAX reference of the PyTorch forward (for verification)
# ---------------------------------------------------------------------------
def _reference(x, conv_w, A, lin_w, lin_b):
    x_m1 = jnp.roll(x, 1, axis=1)
    x_p1 = jnp.roll(x, -1, axis=1)
    val = (jnp.einsum("nlc,cd->nld", x_m1, conv_w[:, :, 0].T)
           + jnp.einsum("nlc,cd->nld", x, conv_w[:, :, 1].T)
           + jnp.einsum("nlc,cd->nld", x_p1, conv_w[:, :, 2].T))
    pe = A @ lin_w.T + lin_b
    return val + pe[:, None, :]


if __name__ == "__main__":
    # N nodes (= batch dim), L time steps, c_in features, d_model hidden
    N, L, C_IN, D_MODEL = 16, 8, 4, 32

    key = jax.random.PRNGKey(0)
    k_x, k_conv, k_lw, k_lb = jax.random.split(key, 4)

    x = jax.random.normal(k_x, (N, L, C_IN), dtype=jnp.float32)

    # Conv1d weight (d_model, c_in, 3), kaiming_normal(fan_in, leaky_relu 0.01)
    fan_in = C_IN * 3
    gain = math.sqrt(2.0 / (1.0 + 0.01 ** 2))
    conv_w = jax.random.normal(k_conv, (D_MODEL, C_IN, 3), dtype=jnp.float32) * (
        gain / math.sqrt(fan_in))

    # adjacency from a synthetic ring edge_index over N nodes, row-L2-normalized
    idx = jnp.arange(N)
    A_dense = (jnp.zeros((N, N), jnp.float32)
               .at[idx, (idx + 1) % N].set(1.0)
               .at[idx, (idx - 1) % N].set(1.0))
    A = A_dense / (jnp.linalg.norm(A_dense, axis=1, keepdims=True) + 1e-12)

    # Linear(N, d_model): PyTorch default uniform(-1/sqrt(N), 1/sqrt(N))
    bound = 1.0 / math.sqrt(N)
    lin_w = jax.random.uniform(k_lw, (D_MODEL, N), jnp.float32, -bound, bound)
    lin_b = jax.random.uniform(k_lb, (D_MODEL,), jnp.float32, -bound, bound)

    ref = _reference(x, conv_w, A, lin_w, lin_b)

    # default: fused in-kernel PE, f32 operands (auto block_n -> grid of 2)
    out = jax.block_until_ready(spatial_embedding(x, conv_w, A, lin_w, lin_b))
    assert out.shape == (N, L, D_MODEL)
    assert jnp.allclose(out, ref, atol=1e-4, rtol=1e-4), "mismatch (fused PE)"

    # hoisted-PE variant (what large-N / v7x configs select automatically)
    out_h = jax.block_until_ready(
        spatial_embedding(x, conv_w, A, lin_w, lin_b, hoist_pe=True))
    assert jnp.allclose(out_h, ref, atol=1e-4, rtol=1e-4), "mismatch (hoisted PE)"

    # bf16 conv operands (f32 accumulation / f32 output) for v5e/v6e traffic cut
    out_bf = jax.block_until_ready(
        spatial_embedding(x, conv_w, A, lin_w, lin_b, compute_dtype=jnp.bfloat16))
    assert jnp.allclose(out_bf, ref, atol=5e-2, rtol=5e-2), "mismatch (bf16)"

    print("KERNEL_OK")
</pallas_src>

<mosaic_0001>
module attributes {stable_mosaic.version = 11 : i64} {
  func.func @_se_kernel(%arg0: i32, %arg1: memref<64x12xf32, #tpu.memory_space<vmem>>, %arg2: memref<12x32xf32, #tpu.memory_space<vmem>>, %arg3: memref<8x16xf32, #tpu.memory_space<vmem>>, %arg4: memref<16x32xf32, #tpu.memory_space<vmem>>, %arg5: memref<1x32xf32, #tpu.memory_space<vmem>>, %arg6: memref<8x256xf32, #tpu.memory_space<vmem>>) attributes {dimension_semantics = [#tpu.dimension_semantics<parallel>], iteration_bounds = array<i64: 2>, scalar_prefetch = 0 : i64, scratch_operands = 0 : i64, tpu.core_type = #tpu.core_type<tc>, window_params = [{transform_indices = @transform_0, window_bounds = array<i64: 64, 12>}, {pipeline_mode = #tpu.pipeline_mode<synchronous>, transform_indices = @transform_1, window_bounds = array<i64: 12, 32>}, {transform_indices = @transform_2, window_bounds = array<i64: 8, 16>}, {pipeline_mode = #tpu.pipeline_mode<synchronous>, transform_indices = @transform_3, window_bounds = array<i64: 16, 32>}, {pipeline_mode = #tpu.pipeline_mode<synchronous>, transform_indices = @transform_4, window_bounds = array<i64: 1, 32>}, {transform_indices = @transform_5, window_bounds = array<i64: 8, 256>}]} {
    %c0 = arith.constant 0 : index
    %c0_0 = arith.constant 0 : index
    %0 = vector.load %arg1[%c0, %c0_0] : memref<64x12xf32, #tpu.memory_space<vmem>>, vector<64x12xf32>
    %c0_1 = arith.constant 0 : index
    %c0_2 = arith.constant 0 : index
    %1 = vector.load %arg2[%c0_1, %c0_2] : memref<12x32xf32, #tpu.memory_space<vmem>>, vector<12x32xf32>
    %cst = arith.constant dense<0.000000e+00> : vector<64x32xf32>
    %2 = tpu.matmul %0, %1, %cst {dimension_numbers = #tpu.dot_dimension_numbers<[1], [0], [0], [1], [0, 0, 1, 1], [], []>} : vector<64x12xf32>, vector<12x32xf32>, vector<64x32xf32> -> vector<64x32xf32>
    %c0_3 = arith.constant 0 : index
    %c0_4 = arith.constant 0 : index
    %3 = vector.load %arg3[%c0_3, %c0_4] : memref<8x16xf32, #tpu.memory_space<vmem>>, vector<8x16xf32>
    %c0_5 = arith.constant 0 : index
    %c0_6 = arith.constant 0 : index
    %4 = vector.load %arg4[%c0_5, %c0_6] : memref<16x32xf32, #tpu.memory_space<vmem>>, vector<16x32xf32>
    %cst_7 = arith.constant dense<0.000000e+00> : vector<8x32xf32>
    %5 = tpu.matmul %3, %4, %cst_7 {dimension_numbers = #tpu.dot_dimension_numbers<[1], [0], [0], [1], [0, 0, 1, 1], [], []>} : vector<8x16xf32>, vector<16x32xf32>, vector<8x32xf32> -> vector<8x32xf32>
    %c0_8 = arith.constant 0 : index
    %c0_9 = arith.constant 0 : index
    %6 = vector.load %arg5[%c0_8, %c0_9] : memref<1x32xf32, #tpu.memory_space<vmem>>, vector<1x32xf32>
    %7 = vector.broadcast %6 : vector<1x32xf32> to vector<8x32xf32>
    %8 = arith.addf %5, %7 : vector<8x32xf32>
    %9 = vector.shape_cast %2 : vector<64x32xf32> to vector<8x8x32xf32>
    %10 = vector.shape_cast %8 : vector<8x32xf32> to vector<8x1x32xf32>
    %11 = vector.broadcast %10 : vector<8x1x32xf32> to vector<8x8x32xf32>
    %12 = arith.addf %9, %11 : vector<8x8x32xf32>
    %13 = vector.extract_strided_slice %12 {offsets = [0, 0, 0], sizes = [8, 1, 32], strides = [1, 1, 1]} : vector<8x8x32xf32> to vector<8x1x32xf32>
    %14 = vector.shape_cast %13 : vector<8x1x32xf32> to vector<8x32xf32>
    %15 = vector.extract_strided_slice %12 {offsets = [0, 1, 0], sizes = [8, 1, 32], strides = [1, 1, 1]} : vector<8x8x32xf32> to vector<8x1x32xf32>
    %16 = vector.shape_cast %15 : vector<8x1x32xf32> to vector<8x32xf32>
    %17 = vector.extract_strided_slice %12 {offsets = [0, 2, 0], sizes = [8, 1, 32], strides = [1, 1, 1]} : vector<8x8x32xf32> to vector<8x1x32xf32>
    %18 = vector.shape_cast %17 : vector<8x1x32xf32> to vector<8x32xf32>
    %19 = vector.extract_strided_slice %12 {offsets = [0, 3, 0], sizes = [8, 1, 32], strides = [1, 1, 1]} : vector<8x8x32xf32> to vector<8x1x32xf32>
    %20 = vector.shape_cast %19 : vector<8x1x32xf32> to vector<8x32xf32>
    %21 = vector.extract_strided_slice %12 {offsets = [0, 4, 0], sizes = [8, 1, 32], strides = [1, 1, 1]} : vector<8x8x32xf32> to vector<8x1x32xf32>
    %22 = vector.shape_cast %21 : vector<8x1x32xf32> to vector<8x32xf32>
    %23 = vector.extract_strided_slice %12 {offsets = [0, 5, 0], sizes = [8, 1, 32], strides = [1, 1, 1]} : vector<8x8x32xf32> to vector<8x1x32xf32>
    %24 = vector.shape_cast %23 : vector<8x1x32xf32> to vector<8x32xf32>
    %25 = vector.extract_strided_slice %12 {offsets = [0, 6, 0], sizes = [8, 1, 32], strides = [1, 1, 1]} : vector<8x8x32xf32> to vector<8x1x32xf32>
    %26 = vector.shape_cast %25 : vector<8x1x32xf32> to vector<8x32xf32>
    %27 = vector.extract_strided_slice %12 {offsets = [0, 7, 0], sizes = [8, 1, 32], strides = [1, 1, 1]} : vector<8x8x32xf32> to vector<8x1x32xf32>
    %28 = vector.shape_cast %27 : vector<8x1x32xf32> to vector<8x32xf32>
    %29 = tpu.concatenate %14, %16, %18, %20, %22, %24, %26, %28 in 1 : vector<8x32xf32>, vector<8x32xf32>, vector<8x32xf32>, vector<8x32xf32>, vector<8x32xf32>, vector<8x32xf32>, vector<8x32xf32>, vector<8x32xf32> -> vector<8x256xf32>
    %c0_10 = arith.constant 0 : index
    %c0_11 = arith.constant 0 : index
    %30 = vector.load %arg6[%c0_10, %c0_11] : memref<8x256xf32, #tpu.memory_space<vmem>>, vector<8x256xf32>
    tpu.vector_store %arg6[%c0_10, %c0_11], %29 {strides = array<i32>} : memref<8x256xf32, #tpu.memory_space<vmem>>, vector<8x256xf32>,
    return
  }
  func.func @transform_0(%arg0: i32) -> (i32, i32) {
    %c0_i32 = arith.constant 0 : i32
    %c0_i32_0 = arith.constant 0 : i32
    return %arg0, %c0_i32 : i32, i32
  }
  func.func @transform_1(%arg0: i32) -> (i32, i32) {
    %c0_i32 = arith.constant 0 : i32
    %c0_i32_0 = arith.constant 0 : i32
    %c0_i32_1 = arith.constant 0 : i32
    return %c0_i32, %c0_i32_0 : i32, i32
  }
  func.func @transform_2(%arg0: i32) -> (i32, i32) {
    %c0_i32 = arith.constant 0 : i32
    %c0_i32_0 = arith.constant 0 : i32
    return %arg0, %c0_i32 : i32, i32
  }
  func.func @transform_3(%arg0: i32) -> (i32, i32) {
    %c0_i32 = arith.constant 0 : i32
    %c0_i32_0 = arith.constant 0 : i32
    %c0_i32_1 = arith.constant 0 : i32
    return %c0_i32, %c0_i32_0 : i32, i32
  }
  func.func @transform_4(%arg0: i32) -> (i32, i32) {
    %c0_i32 = arith.constant 0 : i32
    %c0_i32_0 = arith.constant 0 : i32
    %c0_i32_1 = arith.constant 0 : i32
    return %c0_i32, %c0_i32_0 : i32, i32
  }
  func.func @transform_5(%arg0: i32) -> (i32, i32) {
    %c0_i32 = arith.constant 0 : i32
    %c0_i32_0 = arith.constant 0 : i32
    return %arg0, %c0_i32 : i32, i32
  }
}

module attributes {stable_mosaic.version = 11 : i64} {
  func.func @_se_kernel(%arg0: i32, %arg1: memref<64x12xf32, #tpu.memory_space<vmem>>, %arg2: memref<12x32xf32, #tpu.memory_space<vmem>>, %arg3: memref<8x16xf32, #tpu.memory_space<vmem>>, %arg4: memref<16x32xf32, #tpu.memory_space<vmem>>, %arg5: memref<1x32xf32, #tpu.memory_space<vmem>>, %arg6: memref<8x256xf32, #tpu.memory_space<vmem>>) attributes {dimension_semantics = [#tpu.dimension_semantics<parallel>], iteration_bounds = array<i64: 2>, scalar_prefetch = 0 : i64, scratch_operands = 0 : i64, tpu.core_type = #tpu.core_type<tc>, window_params = [{transform_indices = @transform_0, window_bounds = array<i64: 64, 12>}, {pipeline_mode = #tpu.pipeline_mode<synchronous>, transform_indices = @transform_1, window_bounds = array<i64: 12, 32>}, {transform_indices = @transform_2, window_bounds = array<i64: 8, 16>}, {pipeline_mode = #tpu.pipeline_mode<synchronous>, transform_indices = @transform_3, window_bounds = array<i64: 16, 32>}, {pipeline_mode = #tpu.pipeline_mode<synchronous>, transform_indices = @transform_4, window_bounds = array<i64: 1, 32>}, {transform_indices = @transform_5, window_bounds = array<i64: 8, 256>}]} {
    %c0 = arith.constant 0 : index
    %c0_0 = arith.constant 0 : index
    %0 = vector.load %arg1[%c0, %c0_0] : memref<64x12xf32, #tpu.memory_space<vmem>>, vector<64x12xf32>
    %c0_1 = arith.constant 0 : index
    %c0_2 = arith.constant 0 : index
    %1 = vector.load %arg2[%c0_1, %c0_2] : memref<12x32xf32, #tpu.memory_space<vmem>>, vector<12x32xf32>
    %cst = arith.constant dense<0.000000e+00> : vector<64x32xf32>
    %2 = tpu.matmul %0, %1, %cst {dimension_numbers = #tpu.dot_dimension_numbers<[1], [0], [0], [1], [0, 0, 1, 1], [], []>} : vector<64x12xf32>, vector<12x32xf32>, vector<64x32xf32> -> vector<64x32xf32>
    %c0_3 = arith.constant 0 : index
    %c0_4 = arith.constant 0 : index
    %3 = vector.load %arg3[%c0_3, %c0_4] : memref<8x16xf32, #tpu.memory_space<vmem>>, vector<8x16xf32>
    %c0_5 = arith.constant 0 : index
    %c0_6 = arith.constant 0 : index
    %4 = vector.load %arg4[%c0_5, %c0_6] : memref<16x32xf32, #tpu.memory_space<vmem>>, vector<16x32xf32>
    %cst_7 = arith.constant dense<0.000000e+00> : vector<8x32xf32>
    %5 = tpu.matmul %3, %4, %cst_7 {dimension_numbers = #tpu.dot_dimension_numbers<[1], [0], [0], [1], [0, 0, 1, 1], [], []>} : vector<8x16xf32>, vector<16x32xf32>, vector<8x32xf32> -> vector<8x32xf32>
    %c0_8 = arith.constant 0 : index
    %c0_9 = arith.constant 0 : index
    %6 = vector.load %arg5[%c0_8, %c0_9] : memref<1x32xf32, #tpu.memory_space<vmem>>, vector<1x32xf32>
    %7 = vector.broadcast %6 : vector<1x32xf32> to vector<8x32xf32>
    %8 = arith.addf %5, %7 : vector<8x32xf32>
    %9 = vector.shape_cast %2 : vector<64x32xf32> to vector<8x8x32xf32>
    %10 = vector.shape_cast %8 : vector<8x32xf32> to vector<8x1x32xf32>
    %11 = vector.broadcast %10 : vector<8x1x32xf32> to vector<8x8x32xf32>
    %12 = arith.addf %9, %11 : vector<8x8x32xf32>
    %13 = vector.extract_strided_slice %12 {offsets = [0, 0, 0], sizes = [8, 1, 32], strides = [1, 1, 1]} : vector<8x8x32xf32> to vector<8x1x32xf32>
    %14 = vector.shape_cast %13 : vector<8x1x32xf32> to vector<8x32xf32>
    %15 = vector.extract_strided_slice %12 {offsets = [0, 1, 0], sizes = [8, 1, 32], strides = [1, 1, 1]} : vector<8x8x32xf32> to vector<8x1x32xf32>
    %16 = vector.shape_cast %15 : vector<8x1x32xf32> to vector<8x32xf32>
    %17 = vector.extract_strided_slice %12 {offsets = [0, 2, 0], sizes = [8, 1, 32], strides = [1, 1, 1]} : vector<8x8x32xf32> to vector<8x1x32xf32>
    %18 = vector.shape_cast %17 : vector<8x1x32xf32> to vector<8x32xf32>
    %19 = vector.extract_strided_slice %12 {offsets = [0, 3, 0], sizes = [8, 1, 32], strides = [1, 1, 1]} : vector<8x8x32xf32> to vector<8x1x32xf32>
    %20 = vector.shape_cast %19 : vector<8x1x32xf32> to vector<8x32xf32>
    %21 = vector.extract_strided_slice %12 {offsets = [0, 4, 0], sizes = [8, 1, 32], strides = [1, 1, 1]} : vector<8x8x32xf32> to vector<8x1x32xf32>
    %22 = vector.shape_cast %21 : vector<8x1x32xf32> to vector<8x32xf32>
    %23 = vector.extract_strided_slice %12 {offsets = [0, 5, 0], sizes = [8, 1, 32], strides = [1, 1, 1]} : vector<8x8x32xf32> to vector<8x1x32xf32>
    %24 = vector.shape_cast %23 : vector<8x1x32xf32> to vector<8x32xf32>
    %25 = vector.extract_strided_slice %12 {offsets = [0, 6, 0], sizes = [8, 1, 32], strides = [1, 1, 1]} : vector<8x8x32xf32> to vector<8x1x32xf32>
    %26 = vector.shape_cast %25 : vector<8x1x32xf32> to vector<8x32xf32>
    %27 = vector.extract_strided_slice %12 {offsets = [0, 7, 0], sizes = [8, 1, 32], strides = [1, 1, 1]} : vector<8x8x32xf32> to vector<8x1x32xf32>
    %28 = vector.shape_cast %27 : vector<8x1x32xf32> to vector<8x32xf32>
    %29 = tpu.concatenate %14, %16, %18, %20, %22, %24, %26, %28 in 1 : vector<8x32xf32>, vector<8x32xf32>, vector<8x32xf32>, vector<8x32xf32>, vector<8x32xf32>, vector<8x32xf32>, vector<8x32xf32>, vector<8x32xf32> -> vector<8x256xf32>
    %c0_10 = arith.constant 0 : index
    %c0_11 = arith.constant 0 : index
    %30 = vector.load %arg6[%c0_10, %c0_11] : memref<8x256xf32, #tpu.memory_space<vmem>>, vector<8x256xf32>
    tpu.vector_store %arg6[%c0_10, %c0_11], %29 {strides = array<i32>} : memref<8x256xf32, #tpu.memory_space<vmem>>, vector<8x256xf32>,
    return
  }
  func.func @transform_0(%arg0: i32) -> (i32, i32) {
    %c0_i32 = arith.constant 0 : i32
    %c0_i32_0 = arith.constant 0 : i32
    return %arg0, %c0_i32 : i32, i32
  }
  func.func @transform_1(%arg0: i32) -> (i32, i32) {
    %c0_i32 = arith.constant 0 : i32
    %c0_i32_0 = arith.constant 0 : i32
    %c0_i32_1 = arith.constant 0 : i32
    return %c0_i32, %c0_i32_0 : i32, i32
  }
  func.func @transform_2(%arg0: i32) -> (i32, i32) {
    %c0_i32 = arith.constant 0 : i32
    %c0_i32_0 = arith.constant 0 : i32
    return %arg0, %c0_i32 : i32, i32
  }
  func.func @transform_3(%arg0: i32) -> (i32, i32) {
    %c0_i32 = arith.constant 0 : i32
    %c0_i32_0 = arith.constant 0 : i32
    %c0_i32_1 = arith.constant 0 : i32
    return %c0_i32, %c0_i32_0 : i32, i32
  }
  func.func @transform_4(%arg0: i32) -> (i32, i32) {
    %c0_i32 = arith.constant 0 : i32
    %c0_i32_0 = arith.constant 0 : i32
    %c0_i32_1 = arith.constant 0 : i32
    return %c0_i32, %c0_i32_0 : i32, i32
  }
  func.func @transform_5(%arg0: i32) -> (i32, i32) {
    %c0_i32 = arith.constant 0 : i32
    %c0_i32_0 = arith.constant 0 : i32
    return %arg0, %c0_i32 : i32, i32
  }
}

</mosaic_0001>

<llo_original>
// kernel: tpu_custom_call.1
$region0: #{tpu_custom_call.1}
  #allocation0 [shape = 'u32[]', space=smem, size = 0x4, offset = 0x4, fixed_abs, tag = 'smem constant byte address 0x4 - core index']
  #allocation1 [shape = 'u32[144,128]{1,0:T(1,128)}', space=vmem, size = 0x12000, scoped, tag = 'internal scratch']
  %s0 = inlined_call_operand.vmem [shape: f32[128,12], index: 0, kind: input, shape index: {}]
  %s1 = inlined_call_operand.vmem [shape: f32[12,32], index: 1, kind: input, shape index: {}]
  %s2 = inlined_call_operand.vmem [shape: f32[16,16], index: 2, kind: input, shape index: {}]
  %s3 = inlined_call_operand.vmem [shape: f32[16,32], index: 3, kind: input, shape index: {}]
  %s4 = inlined_call_operand.vmem [shape: f32[1,32], index: 4, kind: input, shape index: {}]
  %s5 = inlined_call_operand.hbm [shape: f32[16,256], index: 5, kind: output, shape index: {}]
  %s6 = sld [smem:[#allocation0]]
  $region53: #{tpu_custom_call.1} parent=0
    _
  %s8 = ssub.s32 1, %s6
  %s9 = scalar_select 0, %s8, %s6
  $region1: #{tpu_custom_call.1} parent=0
    #allocation2 [shape = 'u8[16384]{0}', space=vmem, size = 0x4000, scoped, tag = 'output window, operand 0']
    #allocation3 [shape = 's32[2]{0}', space=sflag, size = 0x8, scoped, tag = 'scoped memory for tpu_custom_call.1']
    %10 = vsyncpa [#allocation3], 0
    %s11 = scalar_lea.sflag [#allocation3], 1
    %12 = vsyncpa %s11, 0
    loop: start=0, step=1, limit=4
    $region2: #{tpu_custom_call.1} parent=1 // loop_pre_header
      _
    $region3: #{tpu_custom_call.1} parent=1 // loop_header
      %s14 = sphi 0, %s18
      %p15 = scmp.ge.s32.totalorder %s14, 4
      %s24 = sphi 0, %s26
      %s27 = sphi 0, %s24
      %s28 = sphi 0, %s27
      %s44 = sphi 0, %s28
      %s48 = sphi 0, %s48
      %s50 = sphi 0, %s48
      %s51 = sphi 0, %s50
      %s65 = sphi 0, %s51
      %s71 = sphi 0, %s73
      %s74 = sphi 0, %s71
      %s75 = sphi 0, %s74
      %s91 = sphi 0, %s75
      %s95 = sphi 0, %s95
      %s97 = sphi 0, %s95
      %s98 = sphi 0, %s97
      %s112 = sphi 0, %s98
      %s116 = sphi 0, %s116
      %s118 = sphi 0, %s116
      %s119 = sphi 0, %s118
      %s133 = sphi 0, %s119
      %s139 = sphi 0, %s141
      %s142 = sphi 0, %s139
      %s143 = sphi 0, %s142
      %s159 = sphi 0, %s143
    $region4: #{tpu_custom_call.1} parent=1 // loop_header_branch
      %17 = sbr.rel (%p15) target = $region8
    $region5: #{tpu_custom_call.1} parent=1 // loop_body
      %s19 = ssub.s32 %s14, 1
      %s20 = ssub.s32 %s14, 2
      %s21 = sadd.s32 %s14, 1
      %s22 = ssub.s32 %s14, %s21
      %p23 = scmp.eq.s32.totalorder %s22, 0
      %s25 = sadd.s32 %s24, 1
      %s26 = scalar_select %p23, %s24, %s25
      %p29 = pneg %p23
      %p30 = scmp.eq.s32.totalorder %s14, 1
      %p31 = por %p29, %p30
      %p32 = scmp.ne.s32.totalorder %s24, %s27
      %p33 = scmp.eq.s32.totalorder %s14, 0
      %p34 = por %p32, %p33
      %p35 = scmp.ne.s32.totalorder %s24, %s27
      %p36 = scmp.eq.s32.totalorder %s19, 1
      %p37 = por %p35, %p36
      %p38 = scmp.ne.s32.totalorder %s27, %s28
      %p39 = scmp.eq.s32.totalorder %s19, 0
      %p40 = por %p38, %p39
      %p41 = scmp.ne.s32.totalorder %s27, %s28
      %p42 = scmp.eq.s32.totalorder %s20, 1
      %p43 = por %p41, %p42
      %p45 = scmp.ne.s32.totalorder %s28, %s44
      %p46 = scmp.eq.s32.totalorder %s20, 0
      %p47 = por %p45, %p46
      %s49 = sadd.s32 %s48, 1
      %p52 = scmp.eq.s32.totalorder %s14, 1
      %p53 = scmp.ne.s32.totalorder %s48, %s50
      %p54 = scmp.eq.s32.totalorder %s14, 0
      %p55 = por %p53, %p54
      %p56 = scmp.ne.s32.totalorder %s48, %s50
      %p57 = scmp.eq.s32.totalorder %s19, 1
      %p58 = por %p56, %p57
      %p59 = scmp.ne.s32.totalorder %s50, %s51
      %p60 = scmp.eq.s32.totalorder %s19, 0
      %p61 = por %p59, %p60
      %p62 = scmp.ne.s32.totalorder %s50, %s51
      %p63 = scmp.eq.s32.totalorder %s20, 1
      %p64 = por %p62, %p63
      %p66 = scmp.ne.s32.totalorder %s51, %s65
      %p67 = scmp.eq.s32.totalorder %s20, 0
      %p68 = por %p66, %p67
      %s69 = ssub.s32 %s14, %s21
      %p70 = scmp.eq.s32.totalorder %s69, 0
      %s72 = sadd.s32 %s71, 1
      %s73 = scalar_select %p70, %s71, %s72
      %p76 = pneg %p70
      %p77 = scmp.eq.s32.totalorder %s14, 1
      %p78 = por %p76, %p77
      %p79 = scmp.ne.s32.totalorder %s71, %s74
      %p80 = scmp.eq.s32.totalorder %s14, 0
      %p81 = por %p79, %p80
      %p82 = scmp.ne.s32.totalorder %s71, %s74
      %p83 = scmp.eq.s32.totalorder %s19, 1
      %p84 = por %p82, %p83
      %p85 = scmp.ne.s32.totalorder %s74, %s75
      %p86 = scmp.eq.s32.totalorder %s19, 0
      %p87 = por %p85, %p86
      %p88 = scmp.ne.s32.totalorder %s74, %s75
      %p89 = scmp.eq.s32.totalorder %s20, 1
      %p90 = por %p88, %p89
      %p92 = scmp.ne.s32.totalorder %s75, %s91
      %p93 = scmp.eq.s32.totalorder %s20, 0
      %p94 = por %p92, %p93
      %s96 = sadd.s32 %s95, 1
      %p99 = scmp.eq.s32.totalorder %s14, 1
      %p100 = scmp.ne.s32.totalorder %s95, %s97
      %p101 = scmp.eq.s32.totalorder %s14, 0
      %p102 = por %p100, %p101
      %p103 = scmp.ne.s32.totalorder %s95, %s97
      %p104 = scmp.eq.s32.totalorder %s19, 1
      %p105 = por %p103, %p104
      %p106 = scmp.ne.s32.totalorder %s97, %s98
      %p107 = scmp.eq.s32.totalorder %s19, 0
      %p108 = por %p106, %p107
      %p109 = scmp.ne.s32.totalorder %s97, %s98
      %p110 = scmp.eq.s32.totalorder %s20, 1
      %p111 = por %p109, %p110
      %p113 = scmp.ne.s32.totalorder %s98, %s112
      %p114 = scmp.eq.s32.totalorder %s20, 0
      %p115 = por %p113, %p114
      %s117 = sadd.s32 %s116, 1
      %p120 = scmp.eq.s32.totalorder %s14, 1
      %p121 = scmp.ne.s32.totalorder %s116, %s118
      %p122 = scmp.eq.s32.totalorder %s14, 0
      %p123 = por %p121, %p122
      %p124 = scmp.ne.s32.totalorder %s116, %s118
      %p125 = scmp.eq.s32.totalorder %s19, 1
      %p126 = por %p124, %p125
      %p127 = scmp.ne.s32.totalorder %s118, %s119
      %p128 = scmp.eq.s32.totalorder %s19, 0
      %p129 = por %p127, %p128
      %p130 = scmp.ne.s32.totalorder %s118, %s119
      %p131 = scmp.eq.s32.totalorder %s20, 1
      %p132 = por %p130, %p131
      %p134 = scmp.ne.s32.totalorder %s119, %s133
      %p135 = scmp.eq.s32.totalorder %s20, 0
      %p136 = por %p134, %p135
      %s137 = ssub.s32 %s14, %s21
      %p138 = scmp.eq.s32.totalorder %s137, 0
      %s140 = sadd.s32 %s139, 1
      %s141 = scalar_select %p138, %s139, %s140
      %p144 = pneg %p138
      %p145 = scmp.eq.s32.totalorder %s14, 1
      %p146 = por %p144, %p145
      %p147 = scmp.ne.s32.totalorder %s139, %s142
      %p148 = scmp.eq.s32.totalorder %s14, 0
      %p149 = por %p147, %p148
      %p150 = scmp.ne.s32.totalorder %s139, %s142
      %p151 = scmp.eq.s32.totalorder %s19, 1
      %p152 = por %p150, %p151
      %p153 = scmp.ne.s32.totalorder %s142, %s143
      %p154 = scmp.eq.s32.totalorder %s19, 0
      %p155 = por %p153, %p154
      %p156 = scmp.ne.s32.totalorder %s142, %s143
      %p157 = scmp.eq.s32.totalorder %s20, 1
      %p158 = por %p156, %p157
      %p160 = scmp.ne.s32.totalorder %s143, %s159
      %p161 = scmp.eq.s32.totalorder %s20, 0
      %p162 = por %p160, %p161
      %p163 = scmp.le.s32.totalorder 1, %s14
      %p164 = scmp.lt.s32.totalorder %s14, 3
      %p165 = pnand %p163, %p164
      %p166 = pneg %p165
      // Predicated region
      $region9: #{tpu_custom_call.1} parent=5 // pred_check
        _
      $region10: #{tpu_custom_call.1} parent=5 // pred_check_branch
        %168 = sbr.rel (%p165) target = $region12
      $region11: #{tpu_custom_call.1} parent=5 // pred_region
        %s169 = ssub.s32 %s14, 1
        // Predicated region
        $region13: #{tpu_custom_call.1} parent=11 // pred_check
          %p170 = pneg %p61
        $region14: #{tpu_custom_call.1} parent=11 // pred_check_branch
          %172 = sbr.rel (%p170) target = $region16
        $region15: #{tpu_custom_call.1} parent=11 // pred_region
          _
        $region16: #{tpu_custom_call.1} parent=11 // pred_fallthru
          _
        // Predicated region
        $region17: #{tpu_custom_call.1} parent=11 // pred_check
          %p173 = pneg %p108
        $region18: #{tpu_custom_call.1} parent=11 // pred_check_branch
          %175 = sbr.rel (%p173) target = $region20
        $region19: #{tpu_custom_call.1} parent=11 // pred_region
          _
        $region20: #{tpu_custom_call.1} parent=11 // pred_fallthru
          _
        // Predicated region
        $region21: #{tpu_custom_call.1} parent=11 // pred_check
          %p176 = pneg %p129
        $region22: #{tpu_custom_call.1} parent=11 // pred_check_branch
          %178 = sbr.rel (%p176) target = $region24
        $region23: #{tpu_custom_call.1} parent=11 // pred_region
          _
        $region24: #{tpu_custom_call.1} parent=11 // pred_fallthru
          _
      $region12: #{tpu_custom_call.1} parent=5 // pred_fallthru
        _
      %p179 = scmp.lt.s32.totalorder %s14, 2
      // Predicated region
      $region25: #{tpu_custom_call.1} parent=5 // pred_check
        %p180 = pneg %p179
      $region26: #{tpu_custom_call.1} parent=5 // pred_check_branch
        %182 = sbr.rel (%p180) target = $region28
      $region27: #{tpu_custom_call.1} parent=5 // pred_region
        // Predicated region
        $region29: #{tpu_custom_call.1} parent=27 // pred_check
          %p183 = pneg %p34
        $region30: #{tpu_custom_call.1} parent=27 // pred_check_branch
          %185 = sbr.rel (%p183) target = $region32
        $region31: #{tpu_custom_call.1} parent=27 // pred_region
          %s186 = smul.u32 8, %s14
          %p187 = scmp.lt.s32.totalorder %s186, 15
          %s188 = scalar_select %p187, %s186, 15
          %s189 = smul.addr %s188, 8
          %s190 = scalar_lea.vmem %s0, %s189
          %s191 = smul.u32 8, %s14
        $region32: #{tpu_custom_call.1} parent=27 // pred_fallthru
          _
        // Predicated region
        $region33: #{tpu_custom_call.1} parent=27 // pred_check
          %p192 = pneg %p81
        $region34: #{tpu_custom_call.1} parent=27 // pred_check_branch
          %194 = sbr.rel (%p192) target = $region36
        $region35: #{tpu_custom_call.1} parent=27 // pred_region
          %p195 = scmp.lt.s32.totalorder %s14, 1
          %s196 = scalar_select %p195, %s14, 1
          %s197 = smul.addr %s196, 8
          %s198 = scalar_lea.vmem %s2, %s197
        $region36: #{tpu_custom_call.1} parent=27 // pred_fallthru
          _
      $region28: #{tpu_custom_call.1} parent=5 // pred_fallthru
        _
      %p199 = scmp.le.s32.totalorder 1, %s14
      %p200 = scmp.lt.s32.totalorder %s14, 3
      %p201 = pnand %p199, %p200
      %p202 = pneg %p201
      // Predicated region
      $region37: #{tpu_custom_call.1} parent=5 // pred_check
        _
      $region38: #{tpu_custom_call.1} parent=5 // pred_check_branch
        %204 = sbr.rel (%p201) target = $region40
      $region39: #{tpu_custom_call.1} parent=5 // pred_region
        %s205 = ssub.s32 %s14, 1
        %s206 = smul.u32 8, %s19
        %p207 = scmp.lt.s32.totalorder %s206, 15
        %s208 = scalar_select %p207, %s206, 15
        %s209 = smul.addr %s208, 8
        %s210 = scalar_lea.vmem %s0, %s209
        %p211 = pneg %p40
        %p212 = pneg %p37
        %p213 = pneg %p61
        %p214 = pneg %p58
        %p215 = scmp.lt.s32.totalorder %s19, 1
        %s216 = scalar_select %p215, %s19, 1
        %s217 = smul.addr %s216, 8
        %s218 = scalar_lea.vmem %s2, %s217
        %p219 = pneg %p87
        %p220 = pneg %p84
        %p221 = pneg %p108
        %p222 = pneg %p105
        %p223 = pneg %p129
        %p224 = pneg %p126
        %p225 = pneg %p155
        %p226 = pneg %p152
        %s227 = sand.u32 %s142, 1
        %s228 = scalar_lea.sflag [#allocation3], %s227
        %s229 = sand.u32 %s142, 1
        %s230 = smul.addr %s229, 16
        %s231 = scalar_lea.vmem [#allocation2], %s230
        %s232 = smul.u32 8, %s19
        %p233 = scmp.lt.s32.totalorder %s232, 15
        %s234 = scalar_select %p233, %s232, 15
        %s235 = smul.addr %s234, 8
        %s236 = scalar_lea.vmem %s0, %s235
        %s237 = smul.u32 8, %s19
        %p238 = scmp.lt.s32.totalorder %s19, 1
        %s239 = scalar_select %p238, %s19, 1
        %s240 = smul.addr %s239, 8
        %s241 = scalar_lea.vmem %s2, %s240
        %v242 = vld [vmem:[%s236] sm:$0xff]
        %v243 = vld [vmem:[%s236 + $0x8] sm:$0xff]
        %v244 = vld [vmem:[%s236 + $0x10] sm:$0xff]
        %v245 = vld [vmem:[%s236 + $0x18] sm:$0xff]
        %v246 = vld [vmem:[%s236 + $0x20] sm:$0xff]
        %v247 = vld [vmem:[%s236 + $0x28] sm:$0xff]
        %v248 = vld [vmem:[%s236 + $0x30] sm:$0xff]
        %v249 = vld [vmem:[%s236 + $0x38] sm:$0xff]
        %v250 = vld [vmem:[%s1] sm:$0xff]
        %v251 = vld [vmem:[%s1 + $0x8] sm:$0xf]
        %vm252 = vcmask 97280
        %v254 = vsel %vm252, %v242, 0
        %v257 = vsel %vm252, %v243, 0
        %v260 = vsel %vm252, %v244, 0
        %v263 = vsel %vm252, %v245, 0
        %v266 = vsel %vm252, %v246, 0
        %v269 = vsel %vm252, %v247, 0
        %v272 = vsel %vm252, %v248, 0
        %v275 = vsel %vm252, %v249, 0
        %vm277 = vcmask 1043456
        %v279 = vsel %vm277, %v251, 0
        %281 = vmatprep.subr.mxu0 0.0
        %282 = vmatpush1.msra.mxu0 %v250
        %283 = vmatprep.subr.mxu0 0.0
        %284 = vmatpush1.msra.mxu0 %v279
        %285 = vmatprep.subr.mxu0 0.0
        %286 = vmatpush1.msra.mxu0 0.0
        %287 = vmatprep.subr.mxu0 0.0
        %288 = vmatpush1.msra.mxu0 0.0
        %289 = vmatprep.subr.mxu0 0.0
        %290 = vmatpush1.msra.mxu0 0.0
        %291 = vmatprep.subr.mxu0 0.0
        %292 = vmatpush1.msra.mxu0 0.0
        %293 = vmatprep.subr.mxu0 0.0
        %294 = vmatpush1.msra.mxu0 0.0
        %295 = vmatprep.subr.mxu0 0.0
        %296 = vmatpush1.msra.mxu0 0.0
        %297 = vmatprep.subr.mxu0 0.0
        %298 = vmatpush1.msra.mxu0 0.0
        %299 = vmatprep.subr.mxu0 0.0
        %300 = vmatpush1.msra.mxu0 0.0
        %301 = vmatprep.subr.mxu0 0.0
        %302 = vmatpush1.msra.mxu0 0.0
        %303 = vmatprep.subr.mxu0 0.0
        %304 = vmatpush1.msra.mxu0 0.0
        %305 = vmatprep.subr.mxu0 0.0
        %306 = vmatpush1.msra.mxu0 0.0
        %307 = vmatprep.subr.mxu0 0.0
        %308 = vmatpush1.msra.mxu0 0.0
        %309 = vmatprep.subr.mxu0 0.0
        %310 = vmatpush1.msra.mxu0 0.0
        %311 = vmatprep.subr.mxu0 0.0
        %312 = vmatpush1.msra.mxu0 0.0
        %313 = vmatprep.subr.mxu0 0.0
        %314 = vmatpush1.msra.mxu0 0.0
        %315 = vmatprep.subr.mxu0 0.0
        %316 = vmatpush1.msra.mxu0 0.0
        %317 = vmatprep.subr.mxu0 0.0
        %318 = vmatpush1.msra.mxu0 0.0
        %319 = vmatprep.subr.mxu0 0.0
        %320 = vmatpush1.msra.mxu0 0.0
        %321 = vmatprep.subr.mxu0 0.0
        %322 = vmatpush1.msra.mxu0 0.0
        %323 = vmatprep.subr.mxu0 0.0
        %324 = vmatpush1.msra.mxu0 0.0
        %325 = vmatprep.subr.mxu0 0.0
        %326 = vmatpush1.msra.mxu0 0.0
        %327 = vmatprep.subr.mxu0 0.0
        %328 = vmatpush1.msra.mxu0 0.0
        %329 = vmatprep.subr.mxu0 0.0
        %330 = vmatpush1.msra.mxu0 0.0
        %331 = vmatprep.subr.mxu0 0.0
        %332 = vmatpush1.msra.mxu0 0.0
        %333 = vmatprep.subr.mxu0 0.0
        %334 = vmatpush1.msra.mxu0 0.0
        %335 = vmatprep.subr.mxu0 0.0
        %336 = vmatpush1.msra.mxu0 0.0
        %337 = vmatprep.subr.mxu0 0.0
        %338 = vmatpush1.msra.mxu0 0.0
        %339 = vmatprep.subr.mxu0 0.0
        %340 = vmatpush1.msra.mxu0 0.0
        %341 = vmatprep.subr.mxu0 0.0
        %342 = vmatpush1.msra.mxu0 0.0
        %343 = vmatprep.subr.mxu0 0.0
        %344 = vmatpush1.msra.mxu0 0.0
        %345 = vmatprep.mubr.f32.mxu0 0.0
        %346 = vmatmul.mubr.f32.gmra.mrb[0].mxu0 %v254
        %v347 = vpop.f32.mrb[0].mxu0
        %v348 = vadd.f32 0.0, %v347
        %v349 = vpop.f32.mrb[0].mxu0
        %350 = vmatprep.mubr.f32.mxu0 0.0
        %351 = vmatmul.mubr.f32.gmra.mrb[0].mxu0 %v257
        %v352 = vpop.f32.mrb[0].mxu0
        %v353 = vadd.f32 0.0, %v352
        %v354 = vpop.f32.mrb[0].mxu0
        %355 = vmatprep.mubr.f32.mxu0 0.0
        %356 = vmatmul.mubr.f32.gmra.mrb[0].mxu0 %v260
        %v357 = vpop.f32.mrb[0].mxu0
        %v358 = vadd.f32 0.0, %v357
        %v359 = vpop.f32.mrb[0].mxu0
        %360 = vmatprep.mubr.f32.mxu0 0.0
        %361 = vmatmul.mubr.f32.gmra.mrb[0].mxu0 %v263
        %v362 = vpop.f32.mrb[0].mxu0
        %v363 = vadd.f32 0.0, %v362
        %v364 = vpop.f32.mrb[0].mxu0
        %365 = vmatprep.mubr.f32.mxu0 0.0
        %366 = vmatmul.mubr.f32.gmra.mrb[0].mxu0 %v266
        %v367 = vpop.f32.mrb[0].mxu0
        %v368 = vadd.f32 0.0, %v367
        %v369 = vpop.f32.mrb[0].mxu0
        %370 = vmatprep.mubr.f32.mxu0 0.0
        %371 = vmatmul.mubr.f32.gmra.mrb[0].mxu0 %v269
        %v372 = vpop.f32.mrb[0].mxu0
        %v373 = vadd.f32 0.0, %v372
        %v374 = vpop.f32.mrb[0].mxu0
        %375 = vmatprep.mubr.f32.mxu0 0.0
        %376 = vmatmul.mubr.f32.gmra.mrb[0].mxu0 %v272
        %v377 = vpop.f32.mrb[0].mxu0
        %v378 = vadd.f32 0.0, %v377
        %v379 = vpop.f32.mrb[0].mxu0
        %380 = vmatprep.mubr.f32.mxu0 0.0
        %381 = vmatmul.mubr.f32.gmra.mrb[0].mxu0 %v275
        %v382 = vpop.f32.mrb[0].mxu0
        %v383 = vadd.f32 0.0, %v382
        %v384 = vpop.f32.mrb[0].mxu0
        %385 = vdwg.mxu0
        %v386 = vld [vmem:[%s241] sm:$0xff]
        %v387 = vld [vmem:[%s3] sm:$0xff]
        %v388 = vld [vmem:[%s3 + $0x8] sm:$0xff]
        %v389 = vld [vmem:[%s4] sm:$0x1]
        %v391 = vlaneseq
        %v392 = vshrl.u32 %v391, 7
        %v393 = vsub.s32 0, %v392
        %v394 = vrot.slane %v389, %v393
        %vm396 = vcmask 130048
        %v398 = vsel %vm396, %v386, 0
        %400 = vmatprep.subr.mxu0 0.0
        %401 = vmatpush1.msra.mxu0 %v387
        %402 = vmatprep.subr.mxu0 0.0
        %403 = vmatpush1.msra.mxu0 %v388
        %404 = vmatprep.subr.mxu0 0.0
        %405 = vmatpush1.msra.mxu0 0.0
        %406 = vmatprep.subr.mxu0 0.0
        %407 = vmatpush1.msra.mxu0 0.0
        %408 = vmatprep.subr.mxu0 0.0
        %409 = vmatpush1.msra.mxu0 0.0
        %410 = vmatprep.subr.mxu0 0.0
        %411 = vmatpush1.msra.mxu0 0.0
        %412 = vmatprep.subr.mxu0 0.0
        %413 = vmatpush1.msra.mxu0 0.0
        %414 = vmatprep.subr.mxu0 0.0
        %415 = vmatpush1.msra.mxu0 0.0
        %416 = vmatprep.subr.mxu0 0.0
        %417 = vmatpush1.msra.mxu0 0.0
        %418 = vmatprep.subr.mxu0 0.0
        %419 = vmatpush1.msra.mxu0 0.0
        %420 = vmatprep.subr.mxu0 0.0
        %421 = vmatpush1.msra.mxu0 0.0
        %422 = vmatprep.subr.mxu0 0.0
        %423 = vmatpush1.msra.mxu0 0.0
        %424 = vmatprep.subr.mxu0 0.0
        %425 = vmatpush1.msra.mxu0 0.0
        %426 = vmatprep.subr.mxu0 0.0
        %427 = vmatpush1.msra.mxu0 0.0
        %428 = vmatprep.subr.mxu0 0.0
        %429 = vmatpush1.msra.mxu0 0.0
        %430 = vmatprep.subr.mxu0 0.0
        %431 = vmatpush1.msra.mxu0 0.0
        %432 = vmatprep.subr.mxu0 0.0
        %433 = vmatpush1.msra.mxu0 0.0
        %434 = vmatprep.subr.mxu0 0.0
        %435 = vmatpush1.msra.mxu0 0.0
        %436 = vmatprep.subr.mxu0 0.0
        %437 = vmatpush1.msra.mxu0 0.0
        %438 = vmatprep.subr.mxu0 0.0
        %439 = vmatpush1.msra.mxu0 0.0
        %440 = vmatprep.subr.mxu0 0.0
        %441 = vmatpush1.msra.mxu0 0.0
        %442 = vmatprep.subr.mxu0 0.0
        %443 = vmatpush1.msra.mxu0 0.0
        %444 = vmatprep.subr.mxu0 0.0
        %445 = vmatpush1.msra.mxu0 0.0
        %446 = vmatprep.subr.mxu0 0.0
        %447 = vmatpush1.msra.mxu0 0.0
        %448 = vmatprep.subr.mxu0 0.0
        %449 = vmatpush1.msra.mxu0 0.0
        %450 = vmatprep.subr.mxu0 0.0
        %451 = vmatpush1.msra.mxu0 0.0
        %452 = vmatprep.subr.mxu0 0.0
        %453 = vmatpush1.msra.mxu0 0.0
        %454 = vmatprep.subr.mxu0 0.0
        %455 = vmatpush1.msra.mxu0 0.0
        %456 = vmatprep.subr.mxu0 0.0
        %457 = vmatpush1.msra.mxu0 0.0
        %458 = vmatprep.subr.mxu0 0.0
        %459 = vmatpush1.msra.mxu0 0.0
        %460 = vmatprep.subr.mxu0 0.0
        %461 = vmatpush1.msra.mxu0 0.0
        %462 = vmatprep.subr.mxu0 0.0
        %463 = vmatpush1.msra.mxu0 0.0
        %464 = vmatprep.mubr.f32.mxu0 0.0
        %465 = vmatmul.mubr.f32.gmra.mrb[0].mxu0 %v398
        %v466 = vpop.f32.mrb[0].mxu0
        %v467 = vadd.f32 %v394, %v466
        %v468 = vpop.f32.mrb[0].mxu0
        %469 = vdwg.mxu0
        %v471 = vcombine.high %v467, %v467
        %v473 = vunpack.c.l.s4 1966171168
        %v474 = vunpack.c.0.s8 %v473
        %v475 = vlaneseq
        %v476 = vshrl.u32 %v475, 7
        %v477 = vsub.s32 %v474, %v476
        %v478 = vrot.slane %v467, %v477
        %v480 = vunpack.c.l.s4 1966171168
        %v481 = vunpack.c.0.s8 %v480
        %v482 = vlaneseq
        %v483 = vshrl.u32 %v482, 7
        %v484 = vsub.s32 %v481, %v483
        %v485 = vrot.slane %v471, %v484
        %v486 = vcombine.high %v478, %v478
        %v487 = vcombine.high %v485, %v485
        %v489 = vunpack.c.l.s4 1966171168
        %v490 = vunpack.c.0.s8 %v489
        %v491 = vlaneseq
        %v492 = vshrl.u32 %v491, 7
        %v493 = vsub.s32 %v490, %v492
        %v494 = vrot.slane %v478, %v493
        %v496 = vunpack.c.l.s4 1966171168
        %v497 = vunpack.c.0.s8 %v496
        %v498 = vlaneseq
        %v499 = vshrl.u32 %v498, 7
        %v500 = vsub.s32 %v497, %v499
        %v501 = vrot.slane %v485, %v500
        %v503 = vunpack.c.l.s4 1966171168
        %v504 = vunpack.c.0.s8 %v503
        %v505 = vlaneseq
        %v506 = vshrl.u32 %v505, 7
        %v507 = vsub.s32 %v504, %v506
        %v508 = vrot.slane %v486, %v507
        %v510 = vunpack.c.l.s4 1966171168
        %v511 = vunpack.c.0.s8 %v510
        %v512 = vlaneseq
        %v513 = vshrl.u32 %v512, 7
        %v514 = vsub.s32 %v511, %v513
        %v515 = vrot.slane %v487, %v514
        %v516 = vcombine.high %v494, %v494
        %v517 = vcombine.high %v501, %v501
        %v518 = vcombine.high %v508, %v508
        %v519 = vcombine.high %v515, %v515
        %v520 = vlaneseq
        %v521 = vshrl.u32 %v520, 7
        %v522 = vsub.s32 0, %v521
        %v523 = vrot.slane %v494, %v522
        %v524 = vlaneseq
        %v525 = vshrl.u32 %v524, 7
        %v526 = vsub.s32 0, %v525
        %v527 = vrot.slane %v508, %v526
        %v528 = vlaneseq
        %v529 = vshrl.u32 %v528, 7
        %v530 = vsub.s32 0, %v529
        %v531 = vrot.slane %v516, %v530
        %v532 = vlaneseq
        %v533 = vshrl.u32 %v532, 7
        %v534 = vsub.s32 0, %v533
        %v535 = vrot.slane %v518, %v534
        %v536 = vlaneseq
        %v537 = vshrl.u32 %v536, 7
        %v538 = vsub.s32 0, %v537
        %v539 = vrot.slane %v501, %v538
        %v540 = vlaneseq
        %v541 = vshrl.u32 %v540, 7
        %v542 = vsub.s32 0, %v541
        %v543 = vrot.slane %v515, %v542
        %v544 = vlaneseq
        %v545 = vshrl.u32 %v544, 7
        %v546 = vsub.s32 0, %v545
        %v547 = vrot.slane %v517, %v546
        %v548 = vlaneseq
        %v549 = vshrl.u32 %v548, 7
        %v550 = vsub.s32 0, %v549
        %v551 = vrot.slane %v519, %v550
        %v560 = vadd.f32 %v348, %v523
        %v561 = vadd.f32 %v353, %v527
        %v562 = vadd.f32 %v358, %v531
        %v563 = vadd.f32 %v363, %v535
        %v564 = vadd.f32 %v368, %v539
        %v565 = vadd.f32 %v373, %v543
        %v566 = vadd.f32 %v378, %v547
        %v567 = vadd.f32 %v383, %v551
        %v576 = vrot.slane %v561, 7
        %vm577 = vcmask 1041409
        %v578 = vsel %vm577, %v576, %v560
        %v579 = vrot.slane %v562, 6
        %vm580 = vcmask 1042434
        %v581 = vsel %vm580, %v579, %v578
        %v582 = vrot.slane %v563, 5
        %vm583 = vcmask 1043459
        %v584 = vsel %vm583, %v582, %v581
        %v585 = vrot.slane %v564, 4
        %vm586 = vcmask 1044484
        %v587 = vsel %vm586, %v585, %v584
        %v588 = vrot.slane %v565, 3
        %vm589 = vcmask 1045509
        %v590 = vsel %vm589, %v588, %v587
        %v591 = vrot.slane %v566, 2
        %vm592 = vcmask 1046534
        %v593 = vsel %vm592, %v591, %v590
        %v594 = vrot.slane %v567, 1
        %vm595 = vcmask 1047559
        %v596 = vsel %vm595, %v594, %v593
        %v598 = vrot.slane %v560, 1
        %v599 = vsel %vm577, %v561, %v598
        %v600 = vrot.slane %v562, 7
        %v601 = vsel %vm580, %v600, %v599
        %v602 = vrot.slane %v563, 6
        %v603 = vsel %vm583, %v602, %v601
        %v604 = vrot.slane %v564, 5
        %v605 = vsel %vm586, %v604, %v603
        %v606 = vrot.slane %v565, 4
        %v607 = vsel %vm589, %v606, %v605
        %v608 = vrot.slane %v566, 3
        %v609 = vsel %vm592, %v608, %v607
        %v610 = vrot.slane %v567, 2
        %v611 = vsel %vm595, %v610, %v609
        %612 = vrot.lane.b32.xlu0 %v611, 32
        %v613 = vpop.permute.xlu0 %612
        %v615 = vrot.slane %v560, 2
        %v616 = vrot.slane %v561, 1
        %v617 = vsel %vm577, %v616, %v615
        %v618 = vsel %vm580, %v562, %v617
        %v619 = vrot.slane %v563, 7
        %v620 = vsel %vm583, %v619, %v618
        %v621 = vrot.slane %v564, 6
        %v622 = vsel %vm586, %v621, %v620
        %v623 = vrot.slane %v565, 5
        %v624 = vsel %vm589, %v623, %v622
        %v625 = vrot.slane %v566, 4
        %v626 = vsel %vm592, %v625, %v624
        %v627 = vrot.slane %v567, 3
        %v628 = vsel %vm595, %v627, %v626
        %629 = vrot.lane.b32.xlu0 %v628, 64
        %v630 = vpop.permute.xlu0 %629
        %v632 = vrot.slane %v560, 3
        %v633 = vrot.slane %v561, 2
        %v634 = vsel %vm577, %v633, %v632
        %v635 = vrot.slane %v562, 1
        %v636 = vsel %vm580, %v635, %v634
        %v637 = vsel %vm583, %v563, %v636
        %v638 = vrot.slane %v564, 7
        %v639 = vsel %vm586, %v638, %v637
        %v640 = vrot.slane %v565, 6
        %v641 = vsel %vm589, %v640, %v639
        %v642 = vrot.slane %v566, 5
        %v643 = vsel %vm592, %v642, %v641
        %v644 = vrot.slane %v567, 4
        %v645 = vsel %vm595, %v644, %v643
        %646 = vrot.lane.b32.xlu0 %v645, 96
        %v647 = vpop.permute.xlu0 %646
        %v649 = vrot.slane %v560, 4
        %v650 = vrot.slane %v561, 3
        %v651 = vsel %vm577, %v650, %v649
        %v652 = vrot.slane %v562, 2
        %v653 = vsel %vm580, %v652, %v651
        %v654 = vrot.slane %v563, 1
        %v655 = vsel %vm583, %v654, %v653
        %v656 = vsel %vm586, %v564, %v655
        %v657 = vrot.slane %v565, 7
        %v658 = vsel %vm589, %v657, %v656
        %v659 = vrot.slane %v566, 6
        %v660 = vsel %vm592, %v659, %v658
        %v661 = vrot.slane %v567, 5
        %v662 = vsel %vm595, %v661, %v660
        %v664 = vrot.slane %v560, 5
        %v665 = vrot.slane %v561, 4
        %v666 = vsel %vm577, %v665, %v664
        %v667 = vrot.slane %v562, 3
        %v668 = vsel %vm580, %v667, %v666
        %v669 = vrot.slane %v563, 2
        %v670 = vsel %vm583, %v669, %v668
        %v671 = vrot.slane %v564, 1
        %v672 = vsel %vm586, %v671, %v670
        %v673 = vsel %vm589, %v565, %v672
        %v674 = vrot.slane %v566, 7
        %v675 = vsel %vm592, %v674, %v673
        %v676 = vrot.slane %v567, 6
        %v677 = vsel %vm595, %v676, %v675
        %678 = vrot.lane.b32.xlu0 %v677, 32
        %v679 = vpop.permute.xlu0 %678
        %v681 = vrot.slane %v560, 6
        %v682 = vrot.slane %v561, 5
        %v683 = vsel %vm577, %v682, %v681
        %v684 = vrot.slane %v562, 4
        %v685 = vsel %vm580, %v684, %v683
        %v686 = vrot.slane %v563, 3
        %v687 = vsel %vm583, %v686, %v685
        %v688 = vrot.slane %v564, 2
        %v689 = vsel %vm586, %v688, %v687
        %v690 = vrot.slane %v565, 1
        %v691 = vsel %vm589, %v690, %v689
        %v692 = vsel %vm592, %v566, %v691
        %v693 = vrot.slane %v567, 7
        %v694 = vsel %vm595, %v693, %v692
        %695 = vrot.lane.b32.xlu0 %v694, 64
        %v696 = vpop.permute.xlu0 %695
        %v698 = vrot.slane %v560, 7
        %v699 = vrot.slane %v561, 6
        %v700 = vsel %vm577, %v699, %v698
        %v701 = vrot.slane %v562, 5
        %v702 = vsel %vm580, %v701, %v700
        %v703 = vrot.slane %v563, 4
        %v704 = vsel %vm583, %v703, %v702
        %v705 = vrot.slane %v564, 3
        %v706 = vsel %vm586, %v705, %v704
        %v707 = vrot.slane %v565, 2
        %v708 = vsel %vm589, %v707, %v706
        %v709 = vrot.slane %v566, 1
        %v710 = vsel %vm592, %v709, %v708
        %v711 = vsel %vm595, %v567, %v710
        %712 = vrot.lane.b32.xlu0 %v711, 96
        %v713 = vpop.permute.xlu0 %712
        %vm715 = vcmask 261120
        %v716 = vsel %vm715, %v596, %v613
        %vm717 = vcmask 523264
        %v718 = vsel %vm717, %v716, %v630
        %vm719 = vcmask 785408
        %v720 = vsel %vm719, %v718, %v647
        %v721 = vsel %vm715, %v662, %v679
        %v722 = vsel %vm717, %v721, %v696
        %v723 = vsel %vm719, %v722, %v713
        %724 = vst [vmem:[%s231] sm:$0xff] %v720
        %725 = vst [vmem:[%s231 + $0x8] sm:$0xff] %v723
        %s726 = sand.u32 %s142, 1
        %s727 = scalar_lea.sflag [#allocation3], %s726
        %s728 = sand.u32 %s142, 1
        %s729 = smul.addr %s728, 16
        %s730 = scalar_lea.vmem [#allocation2], %s729
        // Predicated region
        $region41: #{tpu_custom_call.1} parent=39 // pred_check
          %p731 = pneg %p152
        $region42: #{tpu_custom_call.1} parent=39 // pred_check_branch
          %733 = sbr.rel (%p731) target = $region44
        $region43: #{tpu_custom_call.1} parent=39 // pred_region
          %s735 = ssub.s32 256, 256
          %736 = vsyncadd %s727, %s735
          %s737 = smul.addr %s19, 2
          %s738 = smul.addr %s737, 128
          %s739 = scalar_lea.hbm %s5, %s738
          %s741 = sshll.u32 %s730, 4
          %s742 = int_to_ptr.vmem [resolvable:$true] %s741
          %744 = dma.vmem_to_hbm [thread:$0]  %s742, 256, %s739, %s727
        $region44: #{tpu_custom_call.1} parent=39 // pred_fallthru
          _
      $region40: #{tpu_custom_call.1} parent=5 // pred_fallthru
        _
      %p745 = scmp.le.s32.totalorder 2, %s14
      // Predicated region
      $region45: #{tpu_custom_call.1} parent=5 // pred_check
        %p746 = pneg %p745
      $region46: #{tpu_custom_call.1} parent=5 // pred_check_branch
        %748 = sbr.rel (%p746) target = $region48
      $region47: #{tpu_custom_call.1} parent=5 // pred_region
        %s749 = ssub.s32 %s14, 2
        // Predicated region
        $region49: #{tpu_custom_call.1} parent=47 // pred_check
          %p750 = pneg %p158
        $region50: #{tpu_custom_call.1} parent=47 // pred_check_branch
          %752 = sbr.rel (%p750) target = $region52
        $region51: #{tpu_custom_call.1} parent=47 // pred_region
          %s753 = sand.u32 %s143, 1
          %s754 = scalar_lea.sflag [#allocation3], %s753
          %s755 = sand.u32 %s143, 1
          %s756 = smul.addr %s755, 16
          %s757 = scalar_lea.vmem [#allocation2], %s756
          %758 = dma.done %s754, 256
        $region52: #{tpu_custom_call.1} parent=47 // pred_fallthru
          _
      $region48: #{tpu_custom_call.1} parent=5 // pred_fallthru
        _
    $region6: #{tpu_custom_call.1} parent=1 // loop_footer
      %s18 = sadd.s32 1, %s14
    $region7: #{tpu_custom_call.1} parent=1 // loop_footer_branch
      %13 = sbr.rel target = $region3
    $region8: #{tpu_custom_call.1} parent=1 // loop_exit
      _
    %759 = vsyncpa [#allocation3], 1
    %s760 = scalar_lea.sflag [#allocation3], 1
    %761 = vsyncpa %s760, 1

// kernel: tpu_custom_call.1
$region0: #{tpu_custom_call.1}
  #allocation0 [shape = 'u32[]', space=smem, size = 0x4, offset = 0x4, fixed_abs, tag = 'smem constant byte address 0x4 - core index']
  #allocation1 [shape = 'u32[144,128]{1,0:T(1,128)}', space=vmem, size = 0x12000, scoped, tag = 'internal scratch']
  %s0 = inlined_call_operand.vmem [shape: f32[128,12], index: 0, kind: input, shape index: {}]
  %s1 = inlined_call_operand.vmem [shape: f32[12,32], index: 1, kind: input, shape index: {}]
  %s2 = inlined_call_operand.vmem [shape: f32[16,16], index: 2, kind: input, shape index: {}]
  %s3 = inlined_call_operand.vmem [shape: f32[16,32], index: 3, kind: input, shape index: {}]
  %s4 = inlined_call_operand.vmem [shape: f32[1,32], index: 4, kind: input, shape index: {}]
  %s5 = inlined_call_operand.hbm [shape: f32[16,256], index: 5, kind: output, shape index: {}]
  %s6 = sld [smem:[#allocation0]]
  $region53: #{tpu_custom_call.1} parent=0
    _
  %s8 = ssub.s32 1, %s6
  %s9 = scalar_select 0, %s8, %s6
  $region1: #{tpu_custom_call.1} parent=0
    #allocation2 [shape = 'u8[16384]{0}', space=vmem, size = 0x4000, scoped, tag = 'output window, operand 0']
    #allocation3 [shape = 's32[2]{0}', space=sflag, size = 0x8, scoped, tag = 'scoped memory for tpu_custom_call.1']
    %10 = vsyncpa [#allocation3], 0
    %s11 = scalar_lea.sflag [#allocation3], 1
    %12 = vsyncpa %s11, 0
    loop: start=0, step=1, limit=4
    $region2: #{tpu_custom_call.1} parent=1 // loop_pre_header
      _
    $region3: #{tpu_custom_call.1} parent=1 // loop_header
      %s14 = sphi 0, %s18
      %p15 = scmp.ge.s32.totalorder %s14, 4
      %s24 = sphi 0, %s26
      %s27 = sphi 0, %s24
      %s28 = sphi 0, %s27
      %s44 = sphi 0, %s28
      %s48 = sphi 0, %s48
      %s50 = sphi 0, %s48
      %s51 = sphi 0, %s50
      %s65 = sphi 0, %s51
      %s71 = sphi 0, %s73
      %s74 = sphi 0, %s71
      %s75 = sphi 0, %s74
      %s91 = sphi 0, %s75
      %s95 = sphi 0, %s95
      %s97 = sphi 0, %s95
      %s98 = sphi 0, %s97
      %s112 = sphi 0, %s98
      %s116 = sphi 0, %s116
      %s118 = sphi 0, %s116
      %s119 = sphi 0, %s118
      %s133 = sphi 0, %s119
      %s139 = sphi 0, %s141
      %s142 = sphi 0, %s139
      %s143 = sphi 0, %s142
      %s159 = sphi 0, %s143
    $region4: #{tpu_custom_call.1} parent=1 // loop_header_branch
      %17 = sbr.rel (%p15) target = $region8
    $region5: #{tpu_custom_call.1} parent=1 // loop_body
      %s19 = ssub.s32 %s14, 1
      %s20 = ssub.s32 %s14, 2
      %s21 = sadd.s32 %s14, 1
      %s22 = ssub.s32 %s14, %s21
      %p23 = scmp.eq.s32.totalorder %s22, 0
      %s25 = sadd.s32 %s24, 1
      %s26 = scalar_select %p23, %s24, %s25
      %p29 = pneg %p23
      %p30 = scmp.eq.s32.totalorder %s14, 1
      %p31 = por %p29, %p30
      %p32 = scmp.ne.s32.totalorder %s24, %s27
      %p33 = scmp.eq.s32.totalorder %s14, 0
      %p34 = por %p32, %p33
      %p35 = scmp.ne.s32.totalorder %s24, %s27
      %p36 = scmp.eq.s32.totalorder %s19, 1
      %p37 = por %p35, %p36
      %p38 = scmp.ne.s32.totalorder %s27, %s28
      %p39 = scmp.eq.s32.totalorder %s19, 0
      %p40 = por %p38, %p39
      %p41 = scmp.ne.s32.totalorder %s27, %s28
      %p42 = scmp.eq.s32.totalorder %s20, 1
      %p43 = por %p41, %p42
      %p45 = scmp.ne.s32.totalorder %s28, %s44
      %p46 = scmp.eq.s32.totalorder %s20, 0
      %p47 = por %p45, %p46
      %s49 = sadd.s32 %s48, 1
      %p52 = scmp.eq.s32.totalorder %s14, 1
      %p53 = scmp.ne.s32.totalorder %s48, %s50
      %p54 = scmp.eq.s32.totalorder %s14, 0
      %p55 = por %p53, %p54
      %p56 = scmp.ne.s32.totalorder %s48, %s50
      %p57 = scmp.eq.s32.totalorder %s19, 1
      %p58 = por %p56, %p57
      %p59 = scmp.ne.s32.totalorder %s50, %s51
      %p60 = scmp.eq.s32.totalorder %s19, 0
      %p61 = por %p59, %p60
      %p62 = scmp.ne.s32.totalorder %s50, %s51
      %p63 = scmp.eq.s32.totalorder %s20, 1
      %p64 = por %p62, %p63
      %p66 = scmp.ne.s32.totalorder %s51, %s65
      %p67 = scmp.eq.s32.totalorder %s20, 0
      %p68 = por %p66, %p67
      %s69 = ssub.s32 %s14, %s21
      %p70 = scmp.eq.s32.totalorder %s69, 0
      %s72 = sadd.s32 %s71, 1
      %s73 = scalar_select %p70, %s71, %s72
      %p76 = pneg %p70
      %p77 = scmp.eq.s32.totalorder %s14, 1
      %p78 = por %p76, %p77
      %p79 = scmp.ne.s32.totalorder %s71, %s74
      %p80 = scmp.eq.s32.totalorder %s14, 0
      %p81 = por %p79, %p80
      %p82 = scmp.ne.s32.totalorder %s71, %s74
      %p83 = scmp.eq.s32.totalorder %s19, 1
      %p84 = por %p82, %p83
      %p85 = scmp.ne.s32.totalorder %s74, %s75
      %p86 = scmp.eq.s32.totalorder %s19, 0
      %p87 = por %p85, %p86
      %p88 = scmp.ne.s32.totalorder %s74, %s75
      %p89 = scmp.eq.s32.totalorder %s20, 1
      %p90 = por %p88, %p89
      %p92 = scmp.ne.s32.totalorder %s75, %s91
      %p93 = scmp.eq.s32.totalorder %s20, 0
      %p94 = por %p92, %p93
      %s96 = sadd.s32 %s95, 1
      %p99 = scmp.eq.s32.totalorder %s14, 1
      %p100 = scmp.ne.s32.totalorder %s95, %s97
      %p101 = scmp.eq.s32.totalorder %s14, 0
      %p102 = por %p100, %p101
      %p103 = scmp.ne.s32.totalorder %s95, %s97
      %p104 = scmp.eq.s32.totalorder %s19, 1
      %p105 = por %p103, %p104
      %p106 = scmp.ne.s32.totalorder %s97, %s98
      %p107 = scmp.eq.s32.totalorder %s19, 0
      %p108 = por %p106, %p107
      %p109 = scmp.ne.s32.totalorder %s97, %s98
      %p110 = scmp.eq.s32.totalorder %s20, 1
      %p111 = por %p109, %p110
      %p113 = scmp.ne.s32.totalorder %s98, %s112
      %p114 = scmp.eq.s32.totalorder %s20, 0
      %p115 = por %p113, %p114
      %s117 = sadd.s32 %s116, 1
      %p120 = scmp.eq.s32.totalorder %s14, 1
      %p121 = scmp.ne.s32.totalorder %s116, %s118
      %p122 = scmp.eq.s32.totalorder %s14, 0
      %p123 = por %p121, %p122
      %p124 = scmp.ne.s32.totalorder %s116, %s118
      %p125 = scmp.eq.s32.totalorder %s19, 1
      %p126 = por %p124, %p125
      %p127 = scmp.ne.s32.totalorder %s118, %s119
      %p128 = scmp.eq.s32.totalorder %s19, 0
      %p129 = por %p127, %p128
      %p130 = scmp.ne.s32.totalorder %s118, %s119
      %p131 = scmp.eq.s32.totalorder %s20, 1
      %p132 = por %p130, %p131
      %p134 = scmp.ne.s32.totalorder %s119, %s133
      %p135 = scmp.eq.s32.totalorder %s20, 0
      %p136 = por %p134, %p135
      %s137 = ssub.s32 %s14, %s21
      %p138 = scmp.eq.s32.totalorder %s137, 0
      %s140 = sadd.s32 %s139, 1
      %s141 = scalar_select %p138, %s139, %s140
      %p144 = pneg %p138
      %p145 = scmp.eq.s32.totalorder %s14, 1
      %p146 = por %p144, %p145
      %p147 = scmp.ne.s32.totalorder %s139, %s142
      %p148 = scmp.eq.s32.totalorder %s14, 0
      %p149 = por %p147, %p148
      %p150 = scmp.ne.s32.totalorder %s139, %s142
      %p151 = scmp.eq.s32.totalorder %s19, 1
      %p152 = por %p150, %p151
      %p153 = scmp.ne.s32.totalorder %s142, %s143
      %p154 = scmp.eq.s32.totalorder %s19, 0
      %p155 = por %p153, %p154
      %p156 = scmp.ne.s32.totalorder %s142, %s143
      %p157 = scmp.eq.s32.totalorder %s20, 1
      %p158 = por %p156, %p157
      %p160 = scmp.ne.s32.totalorder %s143, %s159
      %p161 = scmp.eq.s32.totalorder %s20, 0
      %p162 = por %p160, %p161
      %p163 = scmp.le.s32.totalorder 1, %s14
      %p164 = scmp.lt.s32.totalorder %s14, 3
      %p165 = pnand %p163, %p164
      %p166 = pneg %p165
      // Predicated region
      $region9: #{tpu_custom_call.1} parent=5 // pred_check
        _
      $region10: #{tpu_custom_call.1} parent=5 // pred_check_branch
        %168 = sbr.rel (%p165) target = $region12
      $region11: #{tpu_custom_call.1} parent=5 // pred_region
        %s169 = ssub.s32 %s14, 1
        // Predicated region
        $region13: #{tpu_custom_call.1} parent=11 // pred_check
          %p170 = pneg %p61
        $region14: #{tpu_custom_call.1} parent=11 // pred_check_branch
          %172 = sbr.rel (%p170) target = $region16
        $region15: #{tpu_custom_call.1} parent=11 // pred_region
          _
        $region16: #{tpu_custom_call.1} parent=11 // pred_fallthru
          _
        // Predicated region
        $region17: #{tpu_custom_call.1} parent=11 // pred_check
          %p173 = pneg %p108
        $region18: #{tpu_custom_call.1} parent=11 // pred_check_branch
          %175 = sbr.rel (%p173) target = $region20
        $region19: #{tpu_custom_call.1} parent=11 // pred_region
          _
        $region20: #{tpu_custom_call.1} parent=11 // pred_fallthru
          _
        // Predicated region
        $region21: #{tpu_custom_call.1} parent=11 // pred_check
          %p176 = pneg %p129
        $region22: #{tpu_custom_call.1} parent=11 // pred_check_branch
          %178 = sbr.rel (%p176) target = $region24
        $region23: #{tpu_custom_call.1} parent=11 // pred_region
          _
        $region24: #{tpu_custom_call.1} parent=11 // pred_fallthru
          _
      $region12: #{tpu_custom_call.1} parent=5 // pred_fallthru
        _
      %p179 = scmp.lt.s32.totalorder %s14, 2
      // Predicated region
      $region25: #{tpu_custom_call.1} parent=5 // pred_check
        %p180 = pneg %p179
      $region26: #{tpu_custom_call.1} parent=5 // pred_check_branch
        %182 = sbr.rel (%p180) target = $region28
      $region27: #{tpu_custom_call.1} parent=5 // pred_region
        // Predicated region
        $region29: #{tpu_custom_call.1} parent=27 // pred_check
          %p183 = pneg %p34
        $region30: #{tpu_custom_call.1} parent=27 // pred_check_branch
          %185 = sbr.rel (%p183) target = $region32
        $region31: #{tpu_custom_call.1} parent=27 // pred_region
          %s186 = smul.u32 8, %s14
          %p187 = scmp.lt.s32.totalorder %s186, 15
          %s188 = scalar_select %p187, %s186, 15
          %s189 = smul.addr %s188, 8
          %s190 = scalar_lea.vmem %s0, %s189
          %s191 = smul.u32 8, %s14
        $region32: #{tpu_custom_call.1} parent=27 // pred_fallthru
          _
        // Predicated region
        $region33: #{tpu_custom_call.1} parent=27 // pred_check
          %p192 = pneg %p81
        $region34: #{tpu_custom_call.1} parent=27 // pred_check_branch
          %194 = sbr.rel (%p192) target = $region36
        $region35: #{tpu_custom_call.1} parent=27 // pred_region
          %p195 = scmp.lt.s32.totalorder %s14, 1
          %s196 = scalar_select %p195, %s14, 1
          %s197 = smul.addr %s196, 8
          %s198 = scalar_lea.vmem %s2, %s197
        $region36: #{tpu_custom_call.1} parent=27 // pred_fallthru
          _
      $region28: #{tpu_custom_call.1} parent=5 // pred_fallthru
        _
      %p199 = scmp.le.s32.totalorder 1, %s14
      %p200 = scmp.lt.s32.totalorder %s14, 3
      %p201 = pnand %p199, %p200
      %p202 = pneg %p201
      // Predicated region
      $region37: #{tpu_custom_call.1} parent=5 // pred_check
        _
      $region38: #{tpu_custom_call.1} parent=5 // pred_check_branch
        %204 = sbr.rel (%p201) target = $region40
      $region39: #{tpu_custom_call.1} parent=5 // pred_region
        %s205 = ssub.s32 %s14, 1
        %s206 = smul.u32 8, %s19
        %p207 = scmp.lt.s32.totalorder %s206, 15
        %s208 = scalar_select %p207, %s206, 15
        %s209 = smul.addr %s208, 8
        %s210 = scalar_lea.vmem %s0, %s209
        %p211 = pneg %p40
        %p212 = pneg %p37
        %p213 = pneg %p61
        %p214 = pneg %p58
        %p215 = scmp.lt.s32.totalorder %s19, 1
        %s216 = scalar_select %p215, %s19, 1
        %s217 = smul.addr %s216, 8
        %s218 = scalar_lea.vmem %s2, %s217
        %p219 = pneg %p87
        %p220 = pneg %p84
        %p221 = pneg %p108
        %p222 = pneg %p105
        %p223 = pneg %p129
        %p224 = pneg %p126
        %p225 = pneg %p155
        %p226 = pneg %p152
        %s227 = sand.u32 %s142, 1
        %s228 = scalar_lea.sflag [#allocation3], %s227
        %s229 = sand.u32 %s142, 1
        %s230 = smul.addr %s229, 16
        %s231 = scalar_lea.vmem [#allocation2], %s230
        %s232 = smul.u32 8, %s19
        %p233 = scmp.lt.s32.totalorder %s232, 15
        %s234 = scalar_select %p233, %s232, 15
        %s235 = smul.addr %s234, 8
        %s236 = scalar_lea.vmem %s0, %s235
        %s237 = smul.u32 8, %s19
        %p238 = scmp.lt.s32.totalorder %s19, 1
        %s239 = scalar_select %p238, %s19, 1
        %s240 = smul.addr %s239, 8
        %s241 = scalar_lea.vmem %s2, %s240
        %v242 = vld [vmem:[%s236] sm:$0xff]
        %v243 = vld [vmem:[%s236 + $0x8] sm:$0xff]
        %v244 = vld [vmem:[%s236 + $0x10] sm:$0xff]
        %v245 = vld [vmem:[%s236 + $0x18] sm:$0xff]
        %v246 = vld [vmem:[%s236 + $0x20] sm:$0xff]
        %v247 = vld [vmem:[%s236 + $0x28] sm:$0xff]
        %v248 = vld [vmem:[%s236 + $0x30] sm:$0xff]
        %v249 = vld [vmem:[%s236 + $0x38] sm:$0xff]
        %v250 = vld [vmem:[%s1] sm:$0xff]
        %v251 = vld [vmem:[%s1 + $0x8] sm:$0xf]
        %vm252 = vcmask 97280
        %v254 = vsel %vm252, %v242, 0
        %v257 = vsel %vm252, %v243, 0
        %v260 = vsel %vm252, %v244, 0
        %v263 = vsel %vm252, %v245, 0
        %v266 = vsel %vm252, %v246, 0
        %v269 = vsel %vm252, %v247, 0
        %v272 = vsel %vm252, %v248, 0
        %v275 = vsel %vm252, %v249, 0
        %vm277 = vcmask 1043456
        %v279 = vsel %vm277, %v251, 0
        %281 = vmatprep.subr.mxu0 0.0
        %282 = vmatpush1.msra.mxu0 %v250
        %283 = vmatprep.subr.mxu0 0.0
        %284 = vmatpush1.msra.mxu0 %v279
        %285 = vmatprep.subr.mxu0 0.0
        %286 = vmatpush1.msra.mxu0 0.0
        %287 = vmatprep.subr.mxu0 0.0
        %288 = vmatpush1.msra.mxu0 0.0
        %289 = vmatprep.subr.mxu0 0.0
        %290 = vmatpush1.msra.mxu0 0.0
        %291 = vmatprep.subr.mxu0 0.0
        %292 = vmatpush1.msra.mxu0 0.0
        %293 = vmatprep.subr.mxu0 0.0
        %294 = vmatpush1.msra.mxu0 0.0
        %295 = vmatprep.subr.mxu0 0.0
        %296 = vmatpush1.msra.mxu0 0.0
        %297 = vmatprep.subr.mxu0 0.0
        %298 = vmatpush1.msra.mxu0 0.0
        %299 = vmatprep.subr.mxu0 0.0
        %300 = vmatpush1.msra.mxu0 0.0
        %301 = vmatprep.subr.mxu0 0.0
        %302 = vmatpush1.msra.mxu0 0.0
        %303 = vmatprep.subr.mxu0 0.0
        %304 = vmatpush1.msra.mxu0 0.0
        %305 = vmatprep.subr.mxu0 0.0
        %306 = vmatpush1.msra.mxu0 0.0
        %307 = vmatprep.subr.mxu0 0.0
        %308 = vmatpush1.msra.mxu0 0.0
        %309 = vmatprep.subr.mxu0 0.0
        %310 = vmatpush1.msra.mxu0 0.0
        %311 = vmatprep.subr.mxu0 0.0
        %312 = vmatpush1.msra.mxu0 0.0
        %313 = vmatprep.subr.mxu0 0.0
        %314 = vmatpush1.msra.mxu0 0.0
        %315 = vmatprep.subr.mxu0 0.0
        %316 = vmatpush1.msra.mxu0 0.0
        %317 = vmatprep.subr.mxu0 0.0
        %318 = vmatpush1.msra.mxu0 0.0
        %319 = vmatprep.subr.mxu0 0.0
        %320 = vmatpush1.msra.mxu0 0.0
        %321 = vmatprep.subr.mxu0 0.0
        %322 = vmatpush1.msra.mxu0 0.0
        %323 = vmatprep.subr.mxu0 0.0
        %324 = vmatpush1.msra.mxu0 0.0
        %325 = vmatprep.subr.mxu0 0.0
        %326 = vmatpush1.msra.mxu0 0.0
        %327 = vmatprep.subr.mxu0 0.0
        %328 = vmatpush1.msra.mxu0 0.0
        %329 = vmatprep.subr.mxu0 0.0
        %330 = vmatpush1.msra.mxu0 0.0
        %331 = vmatprep.subr.mxu0 0.0
        %332 = vmatpush1.msra.mxu0 0.0
        %333 = vmatprep.subr.mxu0 0.0
        %334 = vmatpush1.msra.mxu0 0.0
        %335 = vmatprep.subr.mxu0 0.0
        %336 = vmatpush1.msra.mxu0 0.0
        %337 = vmatprep.subr.mxu0 0.0
        %338 = vmatpush1.msra.mxu0 0.0
        %339 = vmatprep.subr.mxu0 0.0
        %340 = vmatpush1.msra.mxu0 0.0
        %341 = vmatprep.subr.mxu0 0.0
        %342 = vmatpush1.msra.mxu0 0.0
        %343 = vmatprep.subr.mxu0 0.0
        %344 = vmatpush1.msra.mxu0 0.0
        %345 = vmatprep.mubr.f32.mxu0 0.0
        %346 = vmatmul.mubr.f32.gmra.mrb[0].mxu0 %v254
        %v347 = vpop.f32.mrb[0].mxu0
        %v348 = vadd.f32 0.0, %v347
        %v349 = vpop.f32.mrb[0].mxu0
        %350 = vmatprep.mubr.f32.mxu0 0.0
        %351 = vmatmul.mubr.f32.gmra.mrb[0].mxu0 %v257
        %v352 = vpop.f32.mrb[0].mxu0
        %v353 = vadd.f32 0.0, %v352
        %v354 = vpop.f32.mrb[0].mxu0
        %355 = vmatprep.mubr.f32.mxu0 0.0
        %356 = vmatmul.mubr.f32.gmra.mrb[0].mxu0 %v260
        %v357 = vpop.f32.mrb[0].mxu0
        %v358 = vadd.f32 0.0, %v357
        %v359 = vpop.f32.mrb[0].mxu0
        %360 = vmatprep.mubr.f32.mxu0 0.0
        %361 = vmatmul.mubr.f32.gmra.mrb[0].mxu0 %v263
        %v362 = vpop.f32.mrb[0].mxu0
        %v363 = vadd.f32 0.0, %v362
        %v364 = vpop.f32.mrb[0].mxu0
        %365 = vmatprep.mubr.f32.mxu0 0.0
        %366 = vmatmul.mubr.f32.gmra.mrb[0].mxu0 %v266
        %v367 = vpop.f32.mrb[0].mxu0
        %v368 = vadd.f32 0.0, %v367
        %v369 = vpop.f32.mrb[0].mxu0
        %370 = vmatprep.mubr.f32.mxu0 0.0
        %371 = vmatmul.mubr.f32.gmra.mrb[0].mxu0 %v269
        %v372 = vpop.f32.mrb[0].mxu0
        %v373 = vadd.f32 0.0, %v372
        %v374 = vpop.f32.mrb[0].mxu0
        %375 = vmatprep.mubr.f32.mxu0 0.0
        %376 = vmatmul.mubr.f32.gmra.mrb[0].mxu0 %v272
        %v377 = vpop.f32.mrb[0].mxu0
        %v378 = vadd.f32 0.0, %v377
        %v379 = vpop.f32.mrb[0].mxu0
        %380 = vmatprep.mubr.f32.mxu0 0.0
        %381 = vmatmul.mubr.f32.gmra.mrb[0].mxu0 %v275
        %v382 = vpop.f32.mrb[0].mxu0
        %v383 = vadd.f32 0.0, %v382
        %v384 = vpop.f32.mrb[0].mxu0
        %385 = vdwg.mxu0
        %v386 = vld [vmem:[%s241] sm:$0xff]
        %v387 = vld [vmem:[%s3] sm:$0xff]
        %v388 = vld [vmem:[%s3 + $0x8] sm:$0xff]
        %v389 = vld [vmem:[%s4] sm:$0x1]
        %v391 = vlaneseq
        %v392 = vshrl.u32 %v391, 7
        %v393 = vsub.s32 0, %v392
        %v394 = vrot.slane %v389, %v393
        %vm396 = vcmask 130048
        %v398 = vsel %vm396, %v386, 0
        %400 = vmatprep.subr.mxu0 0.0
        %401 = vmatpush1.msra.mxu0 %v387
        %402 = vmatprep.subr.mxu0 0.0
        %403 = vmatpush1.msra.mxu0 %v388
        %404 = vmatprep.subr.mxu0 0.0
        %405 = vmatpush1.msra.mxu0 0.0
        %406 = vmatprep.subr.mxu0 0.0
        %407 = vmatpush1.msra.mxu0 0.0
        %408 = vmatprep.subr.mxu0 0.0
        %409 = vmatpush1.msra.mxu0 0.0
        %410 = vmatprep.subr.mxu0 0.0
        %411 = vmatpush1.msra.mxu0 0.0
        %412 = vmatprep.subr.mxu0 0.0
        %413 = vmatpush1.msra.mxu0 0.0
        %414 = vmatprep.subr.mxu0 0.0
        %415 = vmatpush1.msra.mxu0 0.0
        %416 = vmatprep.subr.mxu0 0.0
        %417 = vmatpush1.msra.mxu0 0.0
        %418 = vmatprep.subr.mxu0 0.0
        %419 = vmatpush1.msra.mxu0 0.0
        %420 = vmatprep.subr.mxu0 0.0
        %421 = vmatpush1.msra.mxu0 0.0
        %422 = vmatprep.subr.mxu0 0.0
        %423 = vmatpush1.msra.mxu0 0.0
        %424 = vmatprep.subr.mxu0 0.0
        %425 = vmatpush1.msra.mxu0 0.0
        %426 = vmatprep.subr.mxu0 0.0
        %427 = vmatpush1.msra.mxu0 0.0
        %428 = vmatprep.subr.mxu0 0.0
        %429 = vmatpush1.msra.mxu0 0.0
        %430 = vmatprep.subr.mxu0 0.0
        %431 = vmatpush1.msra.mxu0 0.0
        %432 = vmatprep.subr.mxu0 0.0
        %433 = vmatpush1.msra.mxu0 0.0
        %434 = vmatprep.subr.mxu0 0.0
        %435 = vmatpush1.msra.mxu0 0.0
        %436 = vmatprep.subr.mxu0 0.0
        %437 = vmatpush1.msra.mxu0 0.0
        %438 = vmatprep.subr.mxu0 0.0
        %439 = vmatpush1.msra.mxu0 0.0
        %440 = vmatprep.subr.mxu0 0.0
        %441 = vmatpush1.msra.mxu0 0.0
        %442 = vmatprep.subr.mxu0 0.0
        %443 = vmatpush1.msra.mxu0 0.0
        %444 = vmatprep.subr.mxu0 0.0
        %445 = vmatpush1.msra.mxu0 0.0
        %446 = vmatprep.subr.mxu0 0.0
        %447 = vmatpush1.msra.mxu0 0.0
        %448 = vmatprep.subr.mxu0 0.0
        %449 = vmatpush1.msra.mxu0 0.0
        %450 = vmatprep.subr.mxu0 0.0
        %451 = vmatpush1.msra.mxu0 0.0
        %452 = vmatprep.subr.mxu0 0.0
        %453 = vmatpush1.msra.mxu0 0.0
        %454 = vmatprep.subr.mxu0 0.0
        %455 = vmatpush1.msra.mxu0 0.0
        %456 = vmatprep.subr.mxu0 0.0
        %457 = vmatpush1.msra.mxu0 0.0
        %458 = vmatprep.subr.mxu0 0.0
        %459 = vmatpush1.msra.mxu0 0.0
        %460 = vmatprep.subr.mxu0 0.0
        %461 = vmatpush1.msra.mxu0 0.0
        %462 = vmatprep.subr.mxu0 0.0
        %463 = vmatpush1.msra.mxu0 0.0
        %464 = vmatprep.mubr.f32.mxu0 0.0
        %465 = vmatmul.mubr.f32.gmra.mrb[0].mxu0 %v398
        %v466 = vpop.f32.mrb[0].mxu0
        %v467 = vadd.f32 %v394, %v466
        %v468 = vpop.f32.mrb[0].mxu0
        %469 = vdwg.mxu0
        %v471 = vcombine.high %v467, %v467
        %v473 = vunpack.c.l.s4 1966171168
        %v474 = vunpack.c.0.s8 %v473
        %v475 = vlaneseq
        %v476 = vshrl.u32 %v475, 7
        %v477 = vsub.s32 %v474, %v476
        %v478 = vrot.slane %v467, %v477
        %v480 = vunpack.c.l.s4 1966171168
        %v481 = vunpack.c.0.s8 %v480
        %v482 = vlaneseq
        %v483 = vshrl.u32 %v482, 7
        %v484 = vsub.s32 %v481, %v483
        %v485 = vrot.slane %v471, %v484
        %v486 = vcombine.high %v478, %v478
        %v487 = vcombine.high %v485, %v485
        %v489 = vunpack.c.l.s4 1966171168
        %v490 = vunpack.c.0.s8 %v489
        %v491 = vlaneseq
        %v492 = vshrl.u32 %v491, 7
        %v493 = vsub.s32 %v490, %v492
        %v494 = vrot.slane %v478, %v493
        %v496 = vunpack.c.l.s4 1966171168
        %v497 = vunpack.c.0.s8 %v496
        %v498 = vlaneseq
        %v499 = vshrl.u32 %v498, 7
        %v500 = vsub.s32 %v497, %v499
        %v501 = vrot.slane %v485, %v500
        %v503 = vunpack.c.l.s4 1966171168
        %v504 = vunpack.c.0.s8 %v503
        %v505 = vlaneseq
        %v506 = vshrl.u32 %v505, 7
        %v507 = vsub.s32 %v504, %v506
        %v508 = vrot.slane %v486, %v507
        %v510 = vunpack.c.l.s4 1966171168
        %v511 = vunpack.c.0.s8 %v510
        %v512 = vlaneseq
        %v513 = vshrl.u32 %v512, 7
        %v514 = vsub.s32 %v511, %v513
        %v515 = vrot.slane %v487, %v514
        %v516 = vcombine.high %v494, %v494
        %v517 = vcombine.high %v501, %v501
        %v518 = vcombine.high %v508, %v508
        %v519 = vcombine.high %v515, %v515
        %v520 = vlaneseq
        %v521 = vshrl.u32 %v520, 7
        %v522 = vsub.s32 0, %v521
        %v523 = vrot.slane %v494, %v522
        %v524 = vlaneseq
        %v525 = vshrl.u32 %v524, 7
        %v526 = vsub.s32 0, %v525
        %v527 = vrot.slane %v508, %v526
        %v528 = vlaneseq
        %v529 = vshrl.u32 %v528, 7
        %v530 = vsub.s32 0, %v529
        %v531 = vrot.slane %v516, %v530
        %v532 = vlaneseq
        %v533 = vshrl.u32 %v532, 7
        %v534 = vsub.s32 0, %v533
        %v535 = vrot.slane %v518, %v534
        %v536 = vlaneseq
        %v537 = vshrl.u32 %v536, 7
        %v538 = vsub.s32 0, %v537
        %v539 = vrot.slane %v501, %v538
        %v540 = vlaneseq
        %v541 = vshrl.u32 %v540, 7
        %v542 = vsub.s32 0, %v541
        %v543 = vrot.slane %v515, %v542
        %v544 = vlaneseq
        %v545 = vshrl.u32 %v544, 7
        %v546 = vsub.s32 0, %v545
        %v547 = vrot.slane %v517, %v546
        %v548 = vlaneseq
        %v549 = vshrl.u32 %v548, 7
        %v550 = vsub.s32 0, %v549
        %v551 = vrot.slane %v519, %v550
        %v560 = vadd.f32 %v348, %v523
        %v561 = vadd.f32 %v353, %v527
        %v562 = vadd.f32 %v358, %v531
        %v563 = vadd.f32 %v363, %v535
        %v564 = vadd.f32 %v368, %v539
        %v565 = vadd.f32 %v373, %v543
        %v566 = vadd.f32 %v378, %v547
        %v567 = vadd.f32 %v383, %v551
        %v576 = vrot.slane %v561, 7
        %vm577 = vcmask 1041409
        %v578 = vsel %vm577, %v576, %v560
        %v579 = vrot.slane %v562, 6
        %vm580 = vcmask 1042434
        %v581 = vsel %vm580, %v579, %v578
        %v582 = vrot.slane %v563, 5
        %vm583 = vcmask 1043459
        %v584 = vsel %vm583, %v582, %v581
        %v585 = vrot.slane %v564, 4
        %vm586 = vcmask 1044484
        %v587 = vsel %vm586, %v585, %v584
        %v588 = vrot.slane %v565, 3
        %vm589 = vcmask 1045509
        %v590 = vsel %vm589, %v588, %v587
        %v591 = vrot.slane %v566, 2
        %vm592 = vcmask 1046534
        %v593 = vsel %vm592, %v591, %v590
        %v594 = vrot.slane %v567, 1
        %vm595 = vcmask 1047559
        %v596 = vsel %vm595, %v594, %v593
        %v598 = vrot.slane %v560, 1
        %v599 = vsel %vm577, %v561, %v598
        %v600 = vrot.slane %v562, 7
        %v601 = vsel %vm580, %v600, %v599
        %v602 = vrot.slane %v563, 6
        %v603 = vsel %vm583, %v602, %v601
        %v604 = vrot.slane %v564, 5
        %v605 = vsel %vm586, %v604, %v603
        %v606 = vrot.slane %v565, 4
        %v607 = vsel %vm589, %v606, %v605
        %v608 = vrot.slane %v566, 3
        %v609 = vsel %vm592, %v608, %v607
        %v610 = vrot.slane %v567, 2
        %v611 = vsel %vm595, %v610, %v609
        %612 = vrot.lane.b32.xlu0 %v611, 32
        %v613 = vpop.permute.xlu0 %612
        %v615 = vrot.slane %v560, 2
        %v616 = vrot.slane %v561, 1
        %v617 = vsel %vm577, %v616, %v615
        %v618 = vsel %vm580, %v562, %v617
        %v619 = vrot.slane %v563, 7
        %v620 = vsel %vm583, %v619, %v618
        %v621 = vrot.slane %v564, 6
        %v622 = vsel %vm586, %v621, %v620
        %v623 = vrot.slane %v565, 5
        %v624 = vsel %vm589, %v623, %v622
        %v625 = vrot.slane %v566, 4
        %v626 = vsel %vm592, %v625, %v624
        %v627 = vrot.slane %v567, 3
        %v628 = vsel %vm595, %v627, %v626
        %629 = vrot.lane.b32.xlu0 %v628, 64
        %v630 = vpop.permute.xlu0 %629
        %v632 = vrot.slane %v560, 3
        %v633 = vrot.slane %v561, 2
        %v634 = vsel %vm577, %v633, %v632
        %v635 = vrot.slane %v562, 1
        %v636 = vsel %vm580, %v635, %v634
        %v637 = vsel %vm583, %v563, %v636
        %v638 = vrot.slane %v564, 7
        %v639 = vsel %vm586, %v638, %v637
        %v640 = vrot.slane %v565, 6
        %v641 = vsel %vm589, %v640, %v639
        %v642 = vrot.slane %v566, 5
        %v643 = vsel %vm592, %v642, %v641
        %v644 = vrot.slane %v567, 4
        %v645 = vsel %vm595, %v644, %v643
        %646 = vrot.lane.b32.xlu0 %v645, 96
        %v647 = vpop.permute.xlu0 %646
        %v649 = vrot.slane %v560, 4
        %v650 = vrot.slane %v561, 3
        %v651 = vsel %vm577, %v650, %v649
        %v652 = vrot.slane %v562, 2
        %v653 = vsel %vm580, %v652, %v651
        %v654 = vrot.slane %v563, 1
        %v655 = vsel %vm583, %v654, %v653
        %v656 = vsel %vm586, %v564, %v655
        %v657 = vrot.slane %v565, 7
        %v658 = vsel %vm589, %v657, %v656
        %v659 = vrot.slane %v566, 6
        %v660 = vsel %vm592, %v659, %v658
        %v661 = vrot.slane %v567, 5
        %v662 = vsel %vm595, %v661, %v660
        %v664 = vrot.slane %v560, 5
        %v665 = vrot.slane %v561, 4
        %v666 = vsel %vm577, %v665, %v664
        %v667 = vrot.slane %v562, 3
        %v668 = vsel %vm580, %v667, %v666
        %v669 = vrot.slane %v563, 2
        %v670 = vsel %vm583, %v669, %v668
        %v671 = vrot.slane %v564, 1
        %v672 = vsel %vm586, %v671, %v670
        %v673 = vsel %vm589, %v565, %v672
        %v674 = vrot.slane %v566, 7
        %v675 = vsel %vm592, %v674, %v673
        %v676 = vrot.slane %v567, 6
        %v677 = vsel %vm595, %v676, %v675
        %678 = vrot.lane.b32.xlu0 %v677, 32
        %v679 = vpop.permute.xlu0 %678
        %v681 = vrot.slane %v560, 6
        %v682 = vrot.slane %v561, 5
        %v683 = vsel %vm577, %v682, %v681
        %v684 = vrot.slane %v562, 4
        %v685 = vsel %vm580, %v684, %v683
        %v686 = vrot.slane %v563, 3
        %v687 = vsel %vm583, %v686, %v685
        %v688 = vrot.slane %v564, 2
        %v689 = vsel %vm586, %v688, %v687
        %v690 = vrot.slane %v565, 1
        %v691 = vsel %vm589, %v690, %v689
        %v692 = vsel %vm592, %v566, %v691
        %v693 = vrot.slane %v567, 7
        %v694 = vsel %vm595, %v693, %v692
        %695 = vrot.lane.b32.xlu0 %v694, 64
        %v696 = vpop.permute.xlu0 %695
        %v698 = vrot.slane %v560, 7
        %v699 = vrot.slane %v561, 6
        %v700 = vsel %vm577, %v699, %v698
        %v701 = vrot.slane %v562, 5
        %v702 = vsel %vm580, %v701, %v700
        %v703 = vrot.slane %v563, 4
        %v704 = vsel %vm583, %v703, %v702
        %v705 = vrot.slane %v564, 3
        %v706 = vsel %vm586, %v705, %v704
        %v707 = vrot.slane %v565, 2
        %v708 = vsel %vm589, %v707, %v706
        %v709 = vrot.slane %v566, 1
        %v710 = vsel %vm592, %v709, %v708
        %v711 = vsel %vm595, %v567, %v710
        %712 = vrot.lane.b32.xlu0 %v711, 96
        %v713 = vpop.permute.xlu0 %712
        %vm715 = vcmask 261120
        %v716 = vsel %vm715, %v596, %v613
        %vm717 = vcmask 523264
        %v718 = vsel %vm717, %v716, %v630
        %vm719 = vcmask 785408
        %v720 = vsel %vm719, %v718, %v647
        %v721 = vsel %vm715, %v662, %v679
        %v722 = vsel %vm717, %v721, %v696
        %v723 = vsel %vm719, %v722, %v713
        %724 = vst [vmem:[%s231] sm:$0xff] %v720
        %725 = vst [vmem:[%s231 + $0x8] sm:$0xff] %v723
        %s726 = sand.u32 %s142, 1
        %s727 = scalar_lea.sflag [#allocation3], %s726
        %s728 = sand.u32 %s142, 1
        %s729 = smul.addr %s728, 16
        %s730 = scalar_lea.vmem [#allocation2], %s729
        // Predicated region
        $region41: #{tpu_custom_call.1} parent=39 // pred_check
          %p731 = pneg %p152
        $region42: #{tpu_custom_call.1} parent=39 // pred_check_branch
          %733 = sbr.rel (%p731) target = $region44
        $region43: #{tpu_custom_call.1} parent=39 // pred_region
          %s735 = ssub.s32 256, 256
          %736 = vsyncadd %s727, %s735
          %s737 = smul.addr %s19, 2
          %s738 = smul.addr %s737, 128
          %s739 = scalar_lea.hbm %s5, %s738
          %s741 = sshll.u32 %s730, 4
          %s742 = int_to_ptr.vmem [resolvable:$true] %s741
          %744 = dma.vmem_to_hbm [thread:$0]  %s742, 256, %s739, %s727
        $region44: #{tpu_custom_call.1} parent=39 // pred_fallthru
          _
      $region40: #{tpu_custom_call.1} parent=5 // pred_fallthru
        _
      %p745 = scmp.le.s32.totalorder 2, %s14
      // Predicated region
      $region45: #{tpu_custom_call.1} parent=5 // pred_check
        %p746 = pneg %p745
      $region46: #{tpu_custom_call.1} parent=5 // pred_check_branch
        %748 = sbr.rel (%p746) target = $region48
      $region47: #{tpu_custom_call.1} parent=5 // pred_region
        %s749 = ssub.s32 %s14, 2
        // Predicated region
        $region49: #{tpu_custom_call.1} parent=47 // pred_check
          %p750 = pneg %p158
        $region50: #{tpu_custom_call.1} parent=47 // pred_check_branch
          %752 = sbr.rel (%p750) target = $region52
        $region51: #{tpu_custom_call.1} parent=47 // pred_region
          %s753 = sand.u32 %s143, 1
          %s754 = scalar_lea.sflag [#allocation3], %s753
          %s755 = sand.u32 %s143, 1
          %s756 = smul.addr %s755, 16
          %s757 = scalar_lea.vmem [#allocation2], %s756
          %758 = dma.done %s754, 256
        $region52: #{tpu_custom_call.1} parent=47 // pred_fallthru
          _
      $region48: #{tpu_custom_call.1} parent=5 // pred_fallthru
        _
    $region6: #{tpu_custom_call.1} parent=1 // loop_footer
      %s18 = sadd.s32 1, %s14
    $region7: #{tpu_custom_call.1} parent=1 // loop_footer_branch
      %13 = sbr.rel target = $region3
    $region8: #{tpu_custom_call.1} parent=1 // loop_exit
      _
    %759 = vsyncpa [#allocation3], 1
    %s760 = scalar_lea.sflag [#allocation3], 1
    %761 = vsyncpa %s760, 1

</llo_original>
